<compile_context>
chip_gen: v5e
topology: v5e:2x2
jax: 0.10.0
libtpu: 0.0.40
codegen_flags: <defaults>
</compile_context>

<pallas_src>
import functools

import jax
import jax.numpy as jnp
from jax import lax
from jax.experimental import pallas as pl
from jax.experimental.pallas import tpu as pltpu


# ============================================================================
# Packed per-step parameter slab
#
#   rows [w1 : w1+d ] : [ gw1 | jw1 ]                       (layer 1, fused)
#   rows [w2 : w2+2h] : blockdiag(gw2, jw2)                 (layer 2)
#   rows [w3 : w3+2h] : [0:h, 0:d] = gw3, [h:2h, h] = jw3   (layer 3, fused)
#   rows [b  : b+3  ] : row0=[gb1|jb1], row1=[gb2|jb2],
#                       row2=(gb3 in cols 0:d, jb3 at col h)
#
# Columns 0:h are the "grad" half, columns h:2h the "jump" half.  Layers 2/3
# are block structured so the halves never mix: a single tall matmul per layer
# serves grad(x), jump(x), jump(x+js) and the S Monte-Carlo evaluations, with
# grad_u read from cols 0:d and the jump scalar read from col h of the output.
# ============================================================================
def pack_step_params(params, N, d, h, dtype=jnp.bfloat16):
    assert h % 8 == 0, "hidden_dim must be a multiple of 8"
    assert d <= h, "kernel layout assumes d <= hidden_dim"
    C = 2 * h
    sub = 16 if jnp.dtype(dtype).itemsize == 2 else 8
    rup = lambda n: -(-n // sub) * sub
    o_w1 = 0
    o_w2 = o_w1 + rup(d)
    o_w3 = o_w2 + C
    o_b = o_w3 + C
    R = o_b + rup(3)

    f32 = jnp.float32
    w = jnp.zeros((N, R, C), f32)
    w = w.at[:, o_w1:o_w1 + d, :h].set(params["gw1"].astype(f32))
    w = w.at[:, o_w1:o_w1 + d, h:].set(params["jw1"].astype(f32))
    w = w.at[:, o_w2:o_w2 + h, :h].set(params["gw2"].astype(f32))
    w = w.at[:, o_w2 + h:o_w2 + C, h:].set(params["jw2"].astype(f32))
    w = w.at[:, o_w3:o_w3 + h, :d].set(params["gw3"].astype(f32))
    w = w.at[:, o_w3 + h:o_w3 + C, h:h + 1].set(params["jw3"].astype(f32))
    w = w.at[:, o_b + 0, :h].set(params["gb1"][:, 0, :].astype(f32))
    w = w.at[:, o_b + 0, h:].set(params["jb1"][:, 0, :].astype(f32))
    w = w.at[:, o_b + 1, :h].set(params["gb2"][:, 0, :].astype(f32))
    w = w.at[:, o_b + 1, h:].set(params["jb2"][:, 0, :].astype(f32))
    w = w.at[:, o_b + 2, :d].set(params["gb3"][:, 0, :].astype(f32))
    w = w.at[:, o_b + 2, h:h + 1].set(params["jb3"][:, 0, :].astype(f32))
    offs = dict(w1=o_w1, w2=o_w2, w3=o_w3, b=o_b)
    return w.astype(dtype), offs, R, C


# ============================================================================
# Pallas kernel: one grid step == one (batch block, time block)
# grid = (batch_blocks [parallel], time_blocks [arbitrary])
# ============================================================================
def _bsde_kernel(u0_ref, xt_ref, dbt_ref, js_ref, mcjs_ref, w_ref, out_ref,
                 *, r, cc, dt, Tn, unroll, d, h, S, bt, offs):
    C = 2 * h
    f32 = jnp.float32
    t_blk = pl.program_id(1)

    @pl.when(t_blk == 0)
    def _():
        out_ref[...] = u0_ref[...]          # u carry lives in the output block

    mcjs = mcjs_ref[...].astype(f32)        # (S, d), step-invariant
    inv_S = 1.0 / S
    cdt = cc * dt
    rdt = r * dt

    def step(t, u):
        x = xt_ref[t].astype(f32)           # (bt, d)
        js = js_ref[t].astype(f32)          # (bt, d)
        dbt = dbt_ref[t].astype(f32)        # (bt, d)
        wt = w_ref[t]                       # (R, C) in the compute dtype
        cdtp = wt.dtype

        W1 = wt[offs["w1"]:offs["w1"] + d, :]          # (d, C) = [gw1 | jw1]
        W2 = wt[offs["w2"]:offs["w2"] + C, :]          # (C, C) blockdiag
        W3 = wt[offs["w3"]:offs["w3"] + C, :]          # (C, C) fused layer 3
        b1 = wt[offs["b"] + 0:offs["b"] + 1, :].astype(f32)
        b2 = wt[offs["b"] + 1:offs["b"] + 2, :].astype(f32)
        b3 = wt[offs["b"] + 2:offs["b"] + 3, :].astype(f32)

        # --- layer 1: ONE matmul for [x ; js ; mc_js] -------------------------
        xin = jnp.concatenate([x, js, mcjs], axis=0)               # (2bt+S, d)
        a1 = jnp.dot(xin.astype(cdtp), W1, preferred_element_type=f32)
        a1x = a1[:bt]                                              # x  @ W1
        a1j = a1[bt:2 * bt]                                        # js @ W1
        a1m = a1[2 * bt:]                                          # mc @ W1

        h1x = jnp.tanh(a1x + b1)                                   # grad+jump(x)
        h1j = jnp.tanh(a1x + a1j + b1)                             # jump(x+js)
        h1m = jnp.tanh((a1x[:, None, :] + a1m[None, :, :] + b1)
                       .reshape(bt * S, C))                        # jump(x+mc_s)

        # --- layers 2/3: one tall matmul each (block weights keep the grad /
        #     jump column halves independent, so garbage never leaks) ---------
        H1 = jnp.concatenate([h1x, h1j, h1m], axis=0)              # (bt*(2+S), C)
        H2 = jnp.tanh(jnp.dot(H1.astype(cdtp), W2,
                              preferred_element_type=f32) + b2)
        out = jnp.dot(H2.astype(cdtp), W3,
                      preferred_element_type=f32) + b3             # (bt*(2+S), C)

        ju = out[:, h:h + 1]                                       # jump scalar col
        ui = ju[:bt]                                               # jump(x)
        uj = ju[bt:2 * bt]                                         # jump(x + js)
        mc_mean = jnp.sum(ju[2 * bt:].reshape(bt, S, 1), axis=1) * inv_S

        drift = jnp.sum(out[:bt, :d] * dbt, axis=-1, keepdims=True)
        total_jump = uj - ui - (mc_mean - ui) * cdt
        return u - rdt * u + drift + total_jump                    # f(u) = r*u

    # Inner time loop: fori_loop bounds vreg live ranges per step; a small
    # static micro-unroll keeps LLO scheduling visibility.
    n_outer = Tn // unroll

    def outer(i, u):
        base = i * unroll
        for k in range(unroll):             # static, tiny
            u = step(base + k, u)
        return u

    u = lax.fori_loop(0, n_outer, outer, out_ref[...])
    out_ref[...] = u


# ============================================================================
# Wrapper: BlockSpecs / grid / VMEM budgeting
# ============================================================================
def _tensorcores_per_device():
    try:
        kind = jax.devices()[0].device_kind.lower()
    except Exception:
        return 1
    # v7x: 2 TCs per chip; v4 / v5p megacore: "parallel" shards across 2 TCs.
    if "v7" in kind or "v4" in kind or "v5p" in kind:
        return 2
    return 1


def _vmem_capacity_bytes():
    try:
        return int(getattr(pltpu.get_tpu_info(), "vmem_capacity_bytes",
                           64 * 1024 * 1024))
    except Exception:
        return 64 * 1024 * 1024


def _grid_step_vmem_bytes(Tn, bt, d, R, C, S, itemsize):
    lane = 128
    sub = 16 if itemsize == 2 else 8
    plane = lambda c: -(-c // lane) * lane
    psub = lambda n: -(-n // sub) * sub
    path = 3 * Tn * psub(bt) * plane(d) * itemsize
    wts = Tn * psub(R) * plane(C) * itemsize
    mc = psub(S) * plane(d) * itemsize
    uio = 2 * psub(bt) * lane * 4
    return 2 * (path + wts + mc + uio)          # x2: double-buffered pipeline


def bsde_forward_pallas(u0, Xt, dBt, jump_size, mc_js, params, *, r, cc, dt,
                        time_block=None, batch_block=None,
                        compute_dtype=jnp.bfloat16):
    N, batch, d = dBt.shape
    S = mc_js.shape[0]
    h = params["gw1"].shape[-1]
    f32 = jnp.float32

    if N == 0:
        return u0.astype(f32)

    # TODO(synk): pad batch / sample_size up to multiples of 8 instead of asserting.
    assert batch % 8 == 0, "batch must be a multiple of 8"
    assert S % 8 == 0, "sample_size must be a multiple of 8"

    sub_rows = 16 if jnp.dtype(compute_dtype).itemsize == 2 else 8

    # --- batch blocking: only split when the device has >1 TensorCore --------
    if batch_block is None:
        if _tensorcores_per_device() >= 2 and batch % (2 * sub_rows) == 0:
            bt = batch // 2
        else:
            bt = batch
    else:
        bt = batch_block
    assert batch % bt == 0 and (bt == batch or bt % sub_rows == 0), (batch, bt)
    assert bt % 8 == 0, "per-core batch block must be a multiple of 8"

    # --- pack per-step weights once into a single slab -----------------------
    packed_w, offs, R, C = pack_step_params(params, N, d, h, dtype=compute_dtype)
    itemsize = jnp.dtype(compute_dtype).itemsize

    # --- time blocking under an explicit VMEM budget (v7x: 64 MiB physical) --
    vmem_cap = _vmem_capacity_bytes()
    budget = min(vmem_cap // 3, 40 * 1024 * 1024)
    tmax = max(1, min(N, time_block if time_block is not None else 16))
    Tn = 1
    for cand in range(1, tmax + 1):
        if N % cand == 0 and _grid_step_vmem_bytes(cand, bt, d, R, C, S,
                                                   itemsize) <= budget:
            Tn = cand
    unroll = 2 if (Tn % 2 == 0 and Tn >= 4) else 1
    est = _grid_step_vmem_bytes(Tn, bt, d, R, C, S, itemsize)
    vmem_limit = int(min(vmem_cap * 3 // 4, max(32 * 1024 * 1024, 2 * est)))

    # --- bf16 weights / path tensors; u carry stays f32 ----------------------
    xt = Xt[:N].astype(compute_dtype)
    db = dBt.astype(compute_dtype)
    js = jump_size.astype(compute_dtype)
    mc = mc_js.astype(compute_dtype)
    u0f = u0.astype(f32)

    kernel = functools.partial(
        _bsde_kernel, r=float(r), cc=float(cc), dt=float(dt),
        Tn=Tn, unroll=unroll, d=d, h=h, S=S, bt=bt, offs=offs)

    grid = (batch // bt, N // Tn)
    # TODO(synk): for v7x at small batch, rewrite the u carry in the affine
    # closed form u_N = a^N u0 + sum_t a^(N-1-t) c_t so the time axis can be
    # marked "parallel" and split across both TensorCores.
    grid_spec = pltpu.PrefetchScalarGridSpec(
        num_scalar_prefetch=0,
        grid=grid,
        in_specs=[
            pl.BlockSpec((bt, 1), lambda b, t: (b, 0)),          # u0
            pl.BlockSpec((Tn, bt, d), lambda b, t: (t, b, 0)),   # Xt[:N]
            pl.BlockSpec((Tn, bt, d), lambda b, t: (t, b, 0)),   # dBt
            pl.BlockSpec((Tn, bt, d), lambda b, t: (t, b, 0)),   # jump_size
            pl.BlockSpec((S, d), lambda b, t: (0, 0)),           # mc_js
            pl.BlockSpec((Tn, R, C), lambda b, t: (t, 0, 0)),    # packed weights
        ],
        out_specs=pl.BlockSpec((bt, 1), lambda b, t: (b, 0)),
    )

    # Advisory cost estimate so XLA schedules around the long-running call.
    n_blk = batch // bt
    m1 = 2 * bt + S
    mt = bt * (2 + S)
    flops = int(N * n_blk * 2 * (m1 * d * C + 2 * mt * C * C))
    trans = int(N * n_blk * 2 * mt * C)
    bytes_acc = int(u0f.nbytes + xt.nbytes + db.nbytes + js.nbytes +
                    n_blk * (mc.nbytes + packed_w.nbytes) + batch * 4)

    return pl.pallas_call(
        kernel,
        out_shape=jax.ShapeDtypeStruct((batch, 1), f32),
        grid_spec=grid_spec,
        compiler_params=pltpu.CompilerParams(
            dimension_semantics=("parallel", "arbitrary"),
            vmem_limit_bytes=vmem_limit),
        cost_estimate=pl.CostEstimate(flops=flops, transcendentals=trans,
                                      bytes_accessed=bytes_acc),
    )(u0f, xt, db, js, mc, packed_w)


# ============================================================================
# Plain-JAX glue: parameter init, SDE path / jump sampling, terminal g,
# and references for correctness checking.
# ============================================================================
def init_params(key, N, d, h):
    ks = jax.random.split(key, 12)
    f32 = jnp.float32

    def lin(k, fan_in, shape):
        return jax.random.normal(k, shape, f32) / jnp.sqrt(float(fan_in))

    def bias(k, shape):
        return 0.1 * jax.random.normal(k, shape, f32)

    return dict(
        gw1=lin(ks[0], d, (N, d, h)), gb1=bias(ks[6], (N, 1, h)),
        gw2=lin(ks[1], h, (N, h, h)), gb2=bias(ks[7], (N, 1, h)),
        gw3=lin(ks[2], h, (N, h, d)), gb3=bias(ks[8], (N, 1, d)),
        jw1=lin(ks[3], d, (N, d, h)), jb1=bias(ks[9], (N, 1, h)),
        jw2=lin(ks[4], h, (N, h, h)), jb2=bias(ks[10], (N, 1, h)),
        jw3=lin(ks[5], h, (N, h, 1)), jb3=bias(ks[11], (N, 1, 1)),
    )


def simulate_sde(key, x0, batch, N, d, mu, beta, dt, r_max, lam, alpha=1.5):
    """Euler path with compound-jump increments (stand-in for eq.FPDE.SDE)."""
    k1, k2, k3, k4 = jax.random.split(key, 4)
    dBt = jax.random.normal(k1, (N, batch, d)) * jnp.sqrt(dt)
    uu = jax.random.uniform(k2, (N, batch, 1), minval=1e-3, maxval=1.0)
    radius = jnp.minimum(uu ** (-1.0 / alpha), r_max)
    dirs = jax.random.normal(k3, (N, batch, d))
    dirs = dirs / jnp.linalg.norm(dirs, axis=-1, keepdims=True)
    occur = (jax.random.uniform(k4, (N, batch, 1)) < lam * dt).astype(jnp.float32)
    jump_size = 0.1 * occur * radius * dirs

    xs = [jnp.broadcast_to(x0, (batch, d)).astype(jnp.float32)]
    for i in range(N):
        xs.append(xs[-1] + mu * dt + beta * dBt[i] + jump_size[i])
    Xt = jnp.stack(xs)  # (N+1, batch, d)
    return Xt, dBt.astype(jnp.float32), jump_size.astype(jnp.float32)


def power_law_samples(key, sample_size, d, r_max, alpha=1.5):
    k1, k2 = jax.random.split(key)
    uu = jax.random.uniform(k1, (sample_size, 1), minval=1e-3, maxval=1.0)
    radius = jnp.minimum(uu ** (-1.0 / alpha), r_max)
    dirs = jax.random.normal(k2, (sample_size, d))
    dirs = dirs / jnp.linalg.norm(dirs, axis=-1, keepdims=True)
    return (0.1 * radius * dirs).astype(jnp.float32)


def terminal_g(x):  # user-supplied terminal condition g
    return jnp.sum(x ** 2, axis=-1, keepdims=True)


def _fnn_ref(x, w1, b1, w2, b2, w3, b3):
    z = jnp.tanh(x @ w1 + b1)
    z = jnp.tanh(z @ w2 + b2)
    return z @ w3 + b3


def bsde_forward_ref(u0, Xt, dBt, jump_size, mc_js, params, *, r, cc, dt):
    """Exact float32 module semantics (original algebra)."""
    N, batch, d = dBt.shape
    S = mc_js.shape[0]
    u = u0
    p = params
    for i in range(N):
        x = Xt[i]
        grad_u = _fnn_ref(x, p["gw1"][i], p["gb1"][i], p["gw2"][i],
                          p["gb2"][i], p["gw3"][i], p["gb3"][i])
        jargs = (p["jw1"][i], p["jb1"][i], p["jw2"][i], p["jb2"][i],
                 p["jw3"][i], p["jb3"][i])
        ui = _fnn_ref(x, *jargs)
        mc_in = (x[:, None, :] + mc_js[None, :, :]).reshape(batch * S, d)
        mc_mean = _fnn_ref(mc_in, *jargs).reshape(batch, S, 1).mean(axis=1)
        total_jump = _fnn_ref(x + jump_size[i], *jargs) - ui \
            - (mc_mean - ui) * cc * dt
        u = u - (r * u) * dt + jnp.sum(grad_u * dBt[i], -1, keepdims=True) \
            + total_jump
    return u


def bsde_forward_ref_quant(u0, Xt, dBt, jump_size, mc_js, params, *, r, cc, dt,
                           compute_dtype=jnp.bfloat16):
    """Reference mirroring the kernel's precision policy (bf16 inputs/weights,
    f32 accumulation).  Uses the ORIGINAL per-network weights, not the packed
    slab, so it independently checks the kernel's fused-weight layout."""
    q = lambda a: jnp.asarray(a, jnp.float32).astype(compute_dtype).astype(jnp.float32)
    N, batch, d = dBt.shape
    S = mc_js.shape[0]
    p = {k: q(v) for k, v in params.items()}
    mcq = q(mc_js)
    u = u0.astype(jnp.float32)

    def l23(z1, w2, b2, w3, b3):
        z2 = jnp.tanh(q(z1) @ w2 + b2)
        return q(z2) @ w3 + b3

    for i in range(N):
        x, js, db = q(Xt[i]), q(jump_size[i]), q(dBt[i])
        g1 = jnp.tanh(x @ p["gw1"][i] + p["gb1"][i])
        grad_u = l23(g1, p["gw2"][i], p["gb2"][i], p["gw3"][i], p["gb3"][i])
        a1x = x @ p["jw1"][i]
        j1x = jnp.tanh(a1x + p["jb1"][i])
        j1j = jnp.tanh(a1x + js @ p["jw1"][i] + p["jb1"][i])
        j1m = jnp.tanh(a1x[:, None, :] + (mcq @ p["jw1"][i])[None, :, :]
                       + p["jb1"][i]).reshape(batch * S, -1)
        jargs = (p["jw2"][i], p["jb2"][i], p["jw3"][i], p["jb3"][i])
        ui = l23(j1x, *jargs)
        uj = l23(j1j, *jargs)
        mc_mean = l23(j1m, *jargs).reshape(batch, S, 1).mean(axis=1)
        total_jump = uj - ui - (mc_mean - ui) * (cc * dt)
        u = u - (r * dt) * u + jnp.sum(grad_u * db, -1, keepdims=True) \
            + total_jump
    return u


# ============================================================================
if __name__ == "__main__":
    # Small problem sizes consistent with the module's forward
    N, d, hidden = 8, 8, 32
    batch, sample_size = 8, 8
    T, beta, r, mu = 1.0, 0.3, 0.05, 0.1
    r_max, lam, cc = 50.0, 2.0, 1.0
    dt = T / N

    key = jax.random.PRNGKey(0)
    k_par, k_sde, k_mc, k_u = jax.random.split(key, 4)

    params = init_params(k_par, N, d, hidden)
    x0 = jnp.linspace(-1.0, 1.0, d, dtype=jnp.float32)
    Xt, dBt, jump_size = simulate_sde(k_sde, x0, batch, N, d, mu, beta, dt,
                                      r_max, lam)
    mc_js = power_law_samples(k_mc, sample_size, d, r_max)

    u_param = jax.random.uniform(k_u, (1,), jnp.float32)   # nn.Parameter(rand(1))
    u0 = jnp.ones((batch, 1), jnp.float32) * u_param       # ones([batch,1]) * u

    # time_block=4 -> grid time axis of length 2 (exercises the u carry across
    # grid steps) and the fori_loop micro-unroll path inside the kernel.
    u_out = bsde_forward_pallas(u0, Xt, dBt, jump_size, mc_js, params,
                                r=r, cc=cc, dt=dt, time_block=4)
    g_out = terminal_g(Xt[-1])                              # glue: g(Xt[-1])
    jax.block_until_ready((u_out, g_out))

    u_qref = bsde_forward_ref_quant(u0, Xt, dBt, jump_size, mc_js, params,
                                    r=r, cc=cc, dt=dt,
                                    compute_dtype=jnp.bfloat16)
    u_fref = bsde_forward_ref(u0, Xt, dBt, jump_size, mc_js, params,
                              r=r, cc=cc, dt=dt)

    assert u_out.shape == (batch, 1) and g_out.shape == (batch, 1)
    err_q = float(jnp.max(jnp.abs(u_out - u_qref)))   # kernel vs same-precision ref
    err_f = float(jnp.max(jnp.abs(u_out - u_fref)))   # bf16 quantization effect
    assert err_q < 2e-3, f"kernel vs quantized reference differs: {err_q}"
    assert err_f < 2.5e-1, f"kernel vs float32 reference differs: {err_f}"

    print("KERNEL_OK")
</pallas_src>

<mosaic_0001>
module attributes {stable_mosaic.version = 11 : i64} {
  func.func @_bsde_kernel(%arg0: i32, %arg1: i32, %arg2: memref<8x1xf32, #tpu.memory_space<vmem>>, %arg3: memref<4x8x8xbf16, #tpu.memory_space<vmem>>, %arg4: memref<4x8x8xbf16, #tpu.memory_space<vmem>>, %arg5: memref<4x8x8xbf16, #tpu.memory_space<vmem>>, %arg6: memref<8x8xbf16, #tpu.memory_space<vmem>>, %arg7: memref<4x160x64xbf16, #tpu.memory_space<vmem>>, %arg8: memref<8x1xf32, #tpu.memory_space<vmem>>) attributes {dimension_semantics = [#tpu.dimension_semantics<parallel>, #tpu.dimension_semantics<arbitrary>], iteration_bounds = array<i64: 1, 2>, scalar_prefetch = 0 : i64, scratch_operands = 0 : i64, tpu.core_type = #tpu.core_type<tc>, window_params = [{transform_indices = @transform_0, window_bounds = array<i64: 8, 1>}, {transform_indices = @transform_1, window_bounds = array<i64: 4, 8, 8>}, {transform_indices = @transform_2, window_bounds = array<i64: 4, 8, 8>}, {transform_indices = @transform_3, window_bounds = array<i64: 4, 8, 8>}, {pipeline_mode = #tpu.pipeline_mode<synchronous>, transform_indices = @transform_4, window_bounds = array<i64: 8, 8>}, {transform_indices = @transform_5, window_bounds = array<i64: 4, 160, 64>}, {transform_indices = @transform_6, window_bounds = array<i64: 8, 1>}]} {
    %c0_i32 = arith.constant 0 : i32
    %0 = arith.cmpi eq, %arg1, %c0_i32 : i32
    %1 = arith.extui %0 : i1 to i32
    %c0_i32_0 = arith.constant 0 : i32
    %2 = arith.cmpi ne, %1, %c0_i32_0 : i32
    scf.if %2 {
      %c0_8 = arith.constant 0 : index
      %c0_9 = arith.constant 0 : index
      %9 = vector.load %arg2[%c0_8, %c0_9] : memref<8x1xf32, #tpu.memory_space<vmem>>, vector<8x1xf32>
      %c0_10 = arith.constant 0 : index
      %c0_11 = arith.constant 0 : index
      %10 = vector.load %arg8[%c0_10, %c0_11] : memref<8x1xf32, #tpu.memory_space<vmem>>, vector<8x1xf32>
      tpu.vector_store %arg8[%c0_10, %c0_11], %9 {strides = array<i32>} : memref<8x1xf32, #tpu.memory_space<vmem>>, vector<8x1xf32>,
    } else {
    }
    %c0 = arith.constant 0 : index
    %c0_1 = arith.constant 0 : index
    %3 = vector.load %arg6[%c0, %c0_1] : memref<8x8xbf16, #tpu.memory_space<vmem>>, vector<8x8xbf16>
    %4 = arith.extf %3 : vector<8x8xbf16> to vector<8x8xf32>
    %c0_2 = arith.constant 0 : index
    %c0_3 = arith.constant 0 : index
    %5 = vector.load %arg8[%c0_2, %c0_3] : memref<8x1xf32, #tpu.memory_space<vmem>>, vector<8x1xf32>
    %c0_i32_4 = arith.constant 0 : i32
    %c2_i32 = arith.constant 2 : i32
    %6 = arith.addi %c0_i32_4, %c2_i32 : i32
    %c1_i32 = arith.constant 1 : i32
    %7 = scf.for %arg9 = %c0_i32_4 to %6 step %c1_i32 iter_args(%arg10 = %5) -> (vector<8x1xf32>)  : i32 {
      %c2_i32_8 = arith.constant 2 : i32
      %9 = arith.muli %arg9, %c2_i32_8 : i32
      %c0_i32_9 = arith.constant 0 : i32
      %10 = arith.addi %9, %c0_i32_9 : i32
      %11 = arith.index_cast %10 : i32 to index
      %c0_10 = arith.constant 0 : index
      %c0_11 = arith.constant 0 : index
      %12 = vector.load %arg3[%11, %c0_10, %c0_11] : memref<4x8x8xbf16, #tpu.memory_space<vmem>>, vector<1x8x8xbf16>
      %13 = vector.shape_cast %12 : vector<1x8x8xbf16> to vector<8x8xbf16>
      %14 = arith.extf %13 : vector<8x8xbf16> to vector<8x8xf32>
      %15 = arith.index_cast %10 : i32 to index
      %c0_12 = arith.constant 0 : index
      %c0_13 = arith.constant 0 : index
      %16 = vector.load %arg5[%15, %c0_12, %c0_13] : memref<4x8x8xbf16, #tpu.memory_space<vmem>>, vector<1x8x8xbf16>
      %17 = vector.shape_cast %16 : vector<1x8x8xbf16> to vector<8x8xbf16>
      %18 = arith.extf %17 : vector<8x8xbf16> to vector<8x8xf32>
      %19 = arith.index_cast %10 : i32 to index
      %c0_14 = arith.constant 0 : index
      %c0_15 = arith.constant 0 : index
      %20 = vector.load %arg4[%19, %c0_14, %c0_15] : memref<4x8x8xbf16, #tpu.memory_space<vmem>>, vector<1x8x8xbf16>
      %21 = vector.shape_cast %20 : vector<1x8x8xbf16> to vector<8x8xbf16>
      %22 = arith.extf %21 : vector<8x8xbf16> to vector<8x8xf32>
      %23 = arith.index_cast %10 : i32 to index
      %c0_16 = arith.constant 0 : index
      %c0_17 = arith.constant 0 : index
      %24 = vector.load %arg7[%23, %c0_16, %c0_17] : memref<4x160x64xbf16, #tpu.memory_space<vmem>>, vector<1x160x64xbf16>
      %25 = vector.shape_cast %24 : vector<1x160x64xbf16> to vector<160x64xbf16>
      %26 = vector.extract_strided_slice %25 {offsets = [0, 0], sizes = [8, 64], strides = [1, 1]} : vector<160x64xbf16> to vector<8x64xbf16>
      %27 = vector.extract_strided_slice %25 {offsets = [16, 0], sizes = [64, 64], strides = [1, 1]} : vector<160x64xbf16> to vector<64x64xbf16>
      %28 = vector.extract_strided_slice %25 {offsets = [80, 0], sizes = [64, 64], strides = [1, 1]} : vector<160x64xbf16> to vector<64x64xbf16>
      %29 = vector.extract_strided_slice %25 {offsets = [144, 0], sizes = [1, 64], strides = [1, 1]} : vector<160x64xbf16> to vector<1x64xbf16>
      %30 = arith.extf %29 : vector<1x64xbf16> to vector<1x64xf32>
      %31 = vector.extract_strided_slice %25 {offsets = [145, 0], sizes = [1, 64], strides = [1, 1]} : vector<160x64xbf16> to vector<1x64xbf16>
      %32 = arith.extf %31 : vector<1x64xbf16> to vector<1x64xf32>
      %33 = vector.extract_strided_slice %25 {offsets = [146, 0], sizes = [1, 64], strides = [1, 1]} : vector<160x64xbf16> to vector<1x64xbf16>
      %34 = arith.extf %33 : vector<1x64xbf16> to vector<1x64xf32>
      %35 = tpu.concatenate %14, %18, %4 in 0 : vector<8x8xf32>, vector<8x8xf32>, vector<8x8xf32> -> vector<24x8xf32>
      %36 = arith.truncf %35 : vector<24x8xf32> to vector<24x8xbf16>
      %cst = arith.constant dense<0.000000e+00> : vector<24x64xf32>
      %37 = tpu.matmul %36, %26, %cst {dimension_numbers = #tpu.dot_dimension_numbers<[1], [0], [0], [1], [0, 0, 1, 1], [], []>} : vector<24x8xbf16>, vector<8x64xbf16>, vector<24x64xf32> -> vector<24x64xf32>
      %38 = vector.extract_strided_slice %37 {offsets = [0, 0], sizes = [8, 64], strides = [1, 1]} : vector<24x64xf32> to vector<8x64xf32>
      %39 = vector.extract_strided_slice %37 {offsets = [8, 0], sizes = [8, 64], strides = [1, 1]} : vector<24x64xf32> to vector<8x64xf32>
      %40 = vector.extract_strided_slice %37 {offsets = [16, 0], sizes = [8, 64], strides = [1, 1]} : vector<24x64xf32> to vector<8x64xf32>
      %41 = vector.broadcast %30 : vector<1x64xf32> to vector<8x64xf32>
      %42 = arith.addf %38, %41 : vector<8x64xf32>
      %43 = math.tanh %42 : vector<8x64xf32>
      %44 = arith.addf %38, %39 : vector<8x64xf32>
      %45 = vector.broadcast %30 : vector<1x64xf32> to vector<8x64xf32>
      %46 = arith.addf %44, %45 : vector<8x64xf32>
      %47 = math.tanh %46 : vector<8x64xf32>
      %48 = vector.shape_cast %38 : vector<8x64xf32> to vector<8x1x64xf32>
      %49 = vector.shape_cast %40 : vector<8x64xf32> to vector<1x8x64xf32>
      %50 = vector.broadcast %48 : vector<8x1x64xf32> to vector<8x8x64xf32>
      %51 = vector.broadcast %49 : vector<1x8x64xf32> to vector<8x8x64xf32>
      %52 = arith.addf %50, %51 : vector<8x8x64xf32>
      %53 = vector.shape_cast %30 : vector<1x64xf32> to vector<1x1x64xf32>
      %54 = vector.broadcast %53 : vector<1x1x64xf32> to vector<8x8x64xf32>
      %55 = arith.addf %52, %54 : vector<8x8x64xf32>
      %56 = vector.shape_cast %55 : vector<8x8x64xf32> to vector<64x64xf32>
      %57 = math.tanh %56 : vector<64x64xf32>
      %58 = tpu.concatenate %43, %47, %57 in 0 : vector<8x64xf32>, vector<8x64xf32>, vector<64x64xf32> -> vector<80x64xf32>
      %59 = arith.truncf %58 : vector<80x64xf32> to vector<80x64xbf16>
      %cst_18 = arith.constant dense<0.000000e+00> : vector<80x64xf32>
      %60 = tpu.matmul %59, %27, %cst_18 {dimension_numbers = #tpu.dot_dimension_numbers<[1], [0], [0], [1], [0, 0, 1, 1], [], []>} : vector<80x64xbf16>, vector<64x64xbf16>, vector<80x64xf32> -> vector<80x64xf32>
      %61 = vector.broadcast %32 : vector<1x64xf32> to vector<80x64xf32>
      %62 = arith.addf %60, %61 : vector<80x64xf32>
      %63 = math.tanh %62 : vector<80x64xf32>
      %64 = arith.truncf %63 : vector<80x64xf32> to vector<80x64xbf16>
      %cst_19 = arith.constant dense<0.000000e+00> : vector<80x64xf32>
      %65 = tpu.matmul %64, %28, %cst_19 {dimension_numbers = #tpu.dot_dimension_numbers<[1], [0], [0], [1], [0, 0, 1, 1], [], []>} : vector<80x64xbf16>, vector<64x64xbf16>, vector<80x64xf32> -> vector<80x64xf32>
      %66 = vector.broadcast %34 : vector<1x64xf32> to vector<80x64xf32>
      %67 = arith.addf %65, %66 : vector<80x64xf32>
      %68 = vector.extract_strided_slice %67 {offsets = [0, 32], sizes = [80, 1], strides = [1, 1]} : vector<80x64xf32> to vector<80x1xf32>
      %69 = vector.extract_strided_slice %68 {offsets = [0, 0], sizes = [8, 1], strides = [1, 1]} : vector<80x1xf32> to vector<8x1xf32>
      %70 = vector.extract_strided_slice %68 {offsets = [8, 0], sizes = [8, 1], strides = [1, 1]} : vector<80x1xf32> to vector<8x1xf32>
      %71 = vector.extract_strided_slice %68 {offsets = [16, 0], sizes = [64, 1], strides = [1, 1]} : vector<80x1xf32> to vector<64x1xf32>
      %72 = vector.shape_cast %71 : vector<64x1xf32> to vector<8x8x1xf32>
      %cst_20 = arith.constant dense<0.000000e+00> : vector<8x1xf32>
      %73 = vector.multi_reduction <add>, %72, %cst_20 [1] : vector<8x8x1xf32> to vector<8x1xf32>
      %cst_21 = arith.constant 1.250000e-01 : f32
      %74 = vector.broadcast %cst_21 : f32 to vector<8x1xf32>
      %75 = arith.mulf %73, %74 : vector<8x1xf32>
      %76 = vector.extract_strided_slice %67 {offsets = [0, 0], sizes = [8, 8], strides = [1, 1]} : vector<80x64xf32> to vector<8x8xf32>
      %77 = arith.mulf %76, %22 : vector<8x8xf32>
      %cst_22 = arith.constant dense<0.000000e+00> : vector<8xf32>
      %78 = vector.multi_reduction <add>, %77, %cst_22 [1] : vector<8x8xf32> to vector<8xf32>
      %79 = vector.shape_cast %78 : vector<8xf32> to vector<8x1xf32>
      %80 = arith.subf %70, %69 : vector<8x1xf32>
      %81 = arith.subf %75, %69 : vector<8x1xf32>
      %cst_23 = arith.constant 1.250000e-01 : f32
      %82 = vector.broadcast %cst_23 : f32 to vector<8x1xf32>
      %83 = arith.mulf %81, %82 : vector<8x1xf32>
      %84 = arith.subf %80, %83 : vector<8x1xf32>
      %cst_24 = arith.constant 6.250000e-03 : f32
      %85 = vector.broadcast %cst_24 : f32 to vector<8x1xf32>
      %86 = arith.mulf %85, %arg10 : vector<8x1xf32>
      %87 = arith.subf %arg10, %86 : vector<8x1xf32>
      %88 = arith.addf %87, %79 : vector<8x1xf32>
      %89 = arith.addf %88, %84 : vector<8x1xf32>
      %c1_i32_25 = arith.constant 1 : i32
      %90 = arith.addi %9, %c1_i32_25 : i32
      %91 = arith.index_cast %90 : i32 to index
      %c0_26 = arith.constant 0 : index
      %c0_27 = arith.constant 0 : index
      %92 = vector.load %arg3[%91, %c0_26, %c0_27] : memref<4x8x8xbf16, #tpu.memory_space<vmem>>, vector<1x8x8xbf16>
      %93 = vector.shape_cast %92 : vector<1x8x8xbf16> to vector<8x8xbf16>
      %94 = arith.extf %93 : vector<8x8xbf16> to vector<8x8xf32>
      %95 = arith.index_cast %90 : i32 to index
      %c0_28 = arith.constant 0 : index
      %c0_29 = arith.constant 0 : index
      %96 = vector.load %arg5[%95, %c0_28, %c0_29] : memref<4x8x8xbf16, #tpu.memory_space<vmem>>, vector<1x8x8xbf16>
      %97 = vector.shape_cast %96 : vector<1x8x8xbf16> to vector<8x8xbf16>
      %98 = arith.extf %97 : vector<8x8xbf16> to vector<8x8xf32>
      %99 = arith.index_cast %90 : i32 to index
      %c0_30 = arith.constant 0 : index
      %c0_31 = arith.constant 0 : index
      %100 = vector.load %arg4[%99, %c0_30, %c0_31] : memref<4x8x8xbf16, #tpu.memory_space<vmem>>, vector<1x8x8xbf16>
      %101 = vector.shape_cast %100 : vector<1x8x8xbf16> to vector<8x8xbf16>
      %102 = arith.extf %101 : vector<8x8xbf16> to vector<8x8xf32>
      %103 = arith.index_cast %90 : i32 to index
      %c0_32 = arith.constant 0 : index
      %c0_33 = arith.constant 0 : index
      %104 = vector.load %arg7[%103, %c0_32, %c0_33] : memref<4x160x64xbf16, #tpu.memory_space<vmem>>, vector<1x160x64xbf16>
      %105 = vector.shape_cast %104 : vector<1x160x64xbf16> to vector<160x64xbf16>
      %106 = vector.extract_strided_slice %105 {offsets = [0, 0], sizes = [8, 64], strides = [1, 1]} : vector<160x64xbf16> to vector<8x64xbf16>
      %107 = vector.extract_strided_slice %105 {offsets = [16, 0], sizes = [64, 64], strides = [1, 1]} : vector<160x64xbf16> to vector<64x64xbf16>
      %108 = vector.extract_strided_slice %105 {offsets = [80, 0], sizes = [64, 64], strides = [1, 1]} : vector<160x64xbf16> to vector<64x64xbf16>
      %109 = vector.extract_strided_slice %105 {offsets = [144, 0], sizes = [1, 64], strides = [1, 1]} : vector<160x64xbf16> to vector<1x64xbf16>
      %110 = arith.extf %109 : vector<1x64xbf16> to vector<1x64xf32>
      %111 = vector.extract_strided_slice %105 {offsets = [145, 0], sizes = [1, 64], strides = [1, 1]} : vector<160x64xbf16> to vector<1x64xbf16>
      %112 = arith.extf %111 : vector<1x64xbf16> to vector<1x64xf32>
      %113 = vector.extract_strided_slice %105 {offsets = [146, 0], sizes = [1, 64], strides = [1, 1]} : vector<160x64xbf16> to vector<1x64xbf16>
      %114 = arith.extf %113 : vector<1x64xbf16> to vector<1x64xf32>
      %115 = tpu.concatenate %94, %98, %4 in 0 : vector<8x8xf32>, vector<8x8xf32>, vector<8x8xf32> -> vector<24x8xf32>
      %116 = arith.truncf %115 : vector<24x8xf32> to vector<24x8xbf16>
      %cst_34 = arith.constant dense<0.000000e+00> : vector<24x64xf32>
      %117 = tpu.matmul %116, %106, %cst_34 {dimension_numbers = #tpu.dot_dimension_numbers<[1], [0], [0], [1], [0, 0, 1, 1], [], []>} : vector<24x8xbf16>, vector<8x64xbf16>, vector<24x64xf32> -> vector<24x64xf32>
      %118 = vector.extract_strided_slice %117 {offsets = [0, 0], sizes = [8, 64], strides = [1, 1]} : vector<24x64xf32> to vector<8x64xf32>
      %119 = vector.extract_strided_slice %117 {offsets = [8, 0], sizes = [8, 64], strides = [1, 1]} : vector<24x64xf32> to vector<8x64xf32>
      %120 = vector.extract_strided_slice %117 {offsets = [16, 0], sizes = [8, 64], strides = [1, 1]} : vector<24x64xf32> to vector<8x64xf32>
      %121 = vector.broadcast %110 : vector<1x64xf32> to vector<8x64xf32>
      %122 = arith.addf %118, %121 : vector<8x64xf32>
      %123 = math.tanh %122 : vector<8x64xf32>
      %124 = arith.addf %118, %119 : vector<8x64xf32>
      %125 = vector.broadcast %110 : vector<1x64xf32> to vector<8x64xf32>
      %126 = arith.addf %124, %125 : vector<8x64xf32>
      %127 = math.tanh %126 : vector<8x64xf32>
      %128 = vector.shape_cast %118 : vector<8x64xf32> to vector<8x1x64xf32>
      %129 = vector.shape_cast %120 : vector<8x64xf32> to vector<1x8x64xf32>
      %130 = vector.broadcast %128 : vector<8x1x64xf32> to vector<8x8x64xf32>
      %131 = vector.broadcast %129 : vector<1x8x64xf32> to vector<8x8x64xf32>
      %132 = arith.addf %130, %131 : vector<8x8x64xf32>
      %133 = vector.shape_cast %110 : vector<1x64xf32> to vector<1x1x64xf32>
      %134 = vector.broadcast %133 : vector<1x1x64xf32> to vector<8x8x64xf32>
      %135 = arith.addf %132, %134 : vector<8x8x64xf32>
      %136 = vector.shape_cast %135 : vector<8x8x64xf32> to vector<64x64xf32>
      %137 = math.tanh %136 : vector<64x64xf32>
      %138 = tpu.concatenate %123, %127, %137 in 0 : vector<8x64xf32>, vector<8x64xf32>, vector<64x64xf32> -> vector<80x64xf32>
      %139 = arith.truncf %138 : vector<80x64xf32> to vector<80x64xbf16>
      %cst_35 = arith.constant dense<0.000000e+00> : vector<80x64xf32>
      %140 = tpu.matmul %139, %107, %cst_35 {dimension_numbers = #tpu.dot_dimension_numbers<[1], [0], [0], [1], [0, 0, 1, 1], [], []>} : vector<80x64xbf16>, vector<64x64xbf16>, vector<80x64xf32> -> vector<80x64xf32>
      %141 = vector.broadcast %112 : vector<1x64xf32> to vector<80x64xf32>
      %142 = arith.addf %140, %141 : vector<80x64xf32>
      %143 = math.tanh %142 : vector<80x64xf32>
      %144 = arith.truncf %143 : vector<80x64xf32> to vector<80x64xbf16>
      %cst_36 = arith.constant dense<0.000000e+00> : vector<80x64xf32>
      %145 = tpu.matmul %144, %108, %cst_36 {dimension_numbers = #tpu.dot_dimension_numbers<[1], [0], [0], [1], [0, 0, 1, 1], [], []>} : vector<80x64xbf16>, vector<64x64xbf16>, vector<80x64xf32> -> vector<80x64xf32>
      %146 = vector.broadcast %114 : vector<1x64xf32> to vector<80x64xf32>
      %147 = arith.addf %145, %146 : vector<80x64xf32>
      %148 = vector.extract_strided_slice %147 {offsets = [0, 32], sizes = [80, 1], strides = [1, 1]} : vector<80x64xf32> to vector<80x1xf32>
      %149 = vector.extract_strided_slice %148 {offsets = [0, 0], sizes = [8, 1], strides = [1, 1]} : vector<80x1xf32> to vector<8x1xf32>
      %150 = vector.extract_strided_slice %148 {offsets = [8, 0], sizes = [8, 1], strides = [1, 1]} : vector<80x1xf32> to vector<8x1xf32>
      %151 = vector.extract_strided_slice %148 {offsets = [16, 0], sizes = [64, 1], strides = [1, 1]} : vector<80x1xf32> to vector<64x1xf32>
      %152 = vector.shape_cast %151 : vector<64x1xf32> to vector<8x8x1xf32>
      %cst_37 = arith.constant dense<0.000000e+00> : vector<8x1xf32>
      %153 = vector.multi_reduction <add>, %152, %cst_37 [1] : vector<8x8x1xf32> to vector<8x1xf32>
      %cst_38 = arith.constant 1.250000e-01 : f32
      %154 = vector.broadcast %cst_38 : f32 to vector<8x1xf32>
      %155 = arith.mulf %153, %154 : vector<8x1xf32>
      %156 = vector.extract_strided_slice %147 {offsets = [0, 0], sizes = [8, 8], strides = [1, 1]} : vector<80x64xf32> to vector<8x8xf32>
      %157 = arith.mulf %156, %102 : vector<8x8xf32>
      %cst_39 = arith.constant dense<0.000000e+00> : vector<8xf32>
      %158 = vector.multi_reduction <add>, %157, %cst_39 [1] : vector<8x8xf32> to vector<8xf32>
      %159 = vector.shape_cast %158 : vector<8xf32> to vector<8x1xf32>
      %160 = arith.subf %150, %149 : vector<8x1xf32>
      %161 = arith.subf %155, %149 : vector<8x1xf32>
      %cst_40 = arith.constant 1.250000e-01 : f32
      %162 = vector.broadcast %cst_40 : f32 to vector<8x1xf32>
      %163 = arith.mulf %161, %162 : vector<8x1xf32>
      %164 = arith.subf %160, %163 : vector<8x1xf32>
      %cst_41 = arith.constant 6.250000e-03 : f32
      %165 = vector.broadcast %cst_41 : f32 to vector<8x1xf32>
      %166 = arith.mulf %165, %89 : vector<8x1xf32>
      %167 = arith.subf %89, %166 : vector<8x1xf32>
      %168 = arith.addf %167, %159 : vector<8x1xf32>
      %169 = arith.addf %168, %164 : vector<8x1xf32>
      scf.yield %169 : vector<8x1xf32>
    }
    %c2_i32_5 = arith.constant 2 : i32
    %c0_6 = arith.constant 0 : index
    %c0_7 = arith.constant 0 : index
    %8 = vector.load %arg8[%c0_6, %c0_7] : memref<8x1xf32, #tpu.memory_space<vmem>>, vector<8x1xf32>
    tpu.vector_store %arg8[%c0_6, %c0_7], %7 {strides = array<i32>} : memref<8x1xf32, #tpu.memory_space<vmem>>, vector<8x1xf32>,
    return
  }
  func.func @transform_0(%arg0: i32, %arg1: i32) -> (i32, i32) {
    %c0_i32 = arith.constant 0 : i32
    %c0_i32_0 = arith.constant 0 : i32
    return %arg0, %c0_i32 : i32, i32
  }
  func.func @transform_1(%arg0: i32, %arg1: i32) -> (i32, i32, i32) {
    %c0_i32 = arith.constant 0 : i32
    %c0_i32_0 = arith.constant 0 : i32
    return %arg1, %arg0, %c0_i32 : i32, i32, i32
  }
  func.func @transform_2(%arg0: i32, %arg1: i32) -> (i32, i32, i32) {
    %c0_i32 = arith.constant 0 : i32
    %c0_i32_0 = arith.constant 0 : i32
    return %arg1, %arg0, %c0_i32 : i32, i32, i32
  }
  func.func @transform_3(%arg0: i32, %arg1: i32) -> (i32, i32, i32) {
    %c0_i32 = arith.constant 0 : i32
    %c0_i32_0 = arith.constant 0 : i32
    return %arg1, %arg0, %c0_i32 : i32, i32, i32
  }
  func.func @transform_4(%arg0: i32, %arg1: i32) -> (i32, i32) {
    %c0_i32 = arith.constant 0 : i32
    %c0_i32_0 = arith.constant 0 : i32
    %c0_i32_1 = arith.constant 0 : i32
    return %c0_i32, %c0_i32_0 : i32, i32
  }
  func.func @transform_5(%arg0: i32, %arg1: i32) -> (i32, i32, i32) {
    %c0_i32 = arith.constant 0 : i32
    %c0_i32_0 = arith.constant 0 : i32
    %c0_i32_1 = arith.constant 0 : i32
    return %arg1, %c0_i32, %c0_i32_0 : i32, i32, i32
  }
  func.func @transform_6(%arg0: i32, %arg1: i32) -> (i32, i32) {
    %c0_i32 = arith.constant 0 : i32
    %c0_i32_0 = arith.constant 0 : i32
    return %arg0, %c0_i32 : i32, i32
  }
}

</mosaic_0001>

<llo_original>
// kernel: tpu_custom_call.1
$region0: #{tpu_custom_call.1}
  #allocation0 [shape = 'u32[]', space=smem, size = 0x4, offset = 0x4, fixed_abs, tag = 'smem constant byte address 0x4 - core index']
  #allocation1 [shape = 'u32[72,128]{1,0:T(1,128)}', space=vmem, size = 0x9000, scoped, tag = 'internal scratch']
  %s0 = inlined_call_operand.vmem [shape: f32[8,1], index: 0, kind: input, shape index: {}]
  %s1 = inlined_call_operand.vmem [shape: bf16[8,8,8], index: 1, kind: input, shape index: {}]
  %s2 = inlined_call_operand.vmem [shape: bf16[8,8,8], index: 2, kind: input, shape index: {}]
  %s3 = inlined_call_operand.vmem [shape: bf16[8,8,8], index: 3, kind: input, shape index: {}]
  %s4 = inlined_call_operand.vmem [shape: bf16[8,8], index: 4, kind: input, shape index: {}]
  %s5 = inlined_call_operand.vmem [shape: bf16[8,160,64], index: 5, kind: input, shape index: {}]
  %s6 = inlined_call_operand.vmem [shape: f32[8,1], index: 6, kind: output, shape index: {}]
  %s7 = sld [smem:[#allocation0]]
  $region68: #{tpu_custom_call.1} parent=0
    _
  %s9 = ssub.s32 1, %s7
  %s10 = scalar_select 0, %s9, %s7
  loop: start=0, step=1, limit=4
  $region2: #{tpu_custom_call.1} parent=0 // loop_pre_header
    _
  $region3: #{tpu_custom_call.1} parent=0 // loop_header
    %s12 = sphi 0, %s16
    %p13 = scmp.ge.s32.totalorder %s12, 4
    %s19 = sphi 0, %s31
    %s20 = sphi 0, %s27
    %s21 = sphi 0, %s19
    %s22 = sphi 0, %s20
    %s23 = sphi 0, %s21
    %s24 = sphi 0, %s22
    %s34 = sphi 0, %s36
    %s37 = sphi 0, %s34
    %s38 = sphi 0, %s37
    %s54 = sphi 0, %s38
    %s62 = sphi 0, %s64
    %s65 = sphi 0, %s62
    %s66 = sphi 0, %s65
    %s82 = sphi 0, %s66
    %s90 = sphi 0, %s92
    %s93 = sphi 0, %s90
    %s94 = sphi 0, %s93
    %s110 = sphi 0, %s94
    %s118 = sphi 0, %s120
    %s121 = sphi 0, %s118
    %s122 = sphi 0, %s121
    %s138 = sphi 0, %s122
    %s142 = sphi 0, %s142
    %s144 = sphi 0, %s142
    %s145 = sphi 0, %s144
    %s159 = sphi 0, %s145
    %s165 = sphi 0, %s167
    %s168 = sphi 0, %s165
    %s169 = sphi 0, %s168
    %s185 = sphi 0, %s169
    %s191 = sphi 0, %s193
    %s194 = sphi 0, %s191
    %s195 = sphi 0, %s194
    %s211 = sphi 0, %s195
  $region4: #{tpu_custom_call.1} parent=0 // loop_header_branch
    %15 = sbr.rel (%p13) target = $region8
  $region5: #{tpu_custom_call.1} parent=0 // loop_body
    %s17 = ssub.s32 %s12, 1
    %s18 = ssub.s32 %s12, 2
    %s25 = sadd.s32 1, %s20
    %p26 = scmp.ge.s32.totalorder %s25, 2
    %s27 = scalar_select %p26, 0, %s25
    %s28 = sadd.s32 1, %s19
    %s29 = scalar_select %p26, %s28, %s19
    %p30 = scmp.ge.s32.totalorder %s29, 1
    %s31 = scalar_select %p30, 0, %s29
    %s32 = ssub.s32 %s19, %s31
    %p33 = scmp.eq.s32.totalorder %s32, 0
    %s35 = sadd.s32 %s34, 1
    %s36 = scalar_select %p33, %s34, %s35
    %p39 = pneg %p33
    %p40 = scmp.eq.s32.totalorder %s12, 1
    %p41 = por %p39, %p40
    %p42 = scmp.ne.s32.totalorder %s34, %s37
    %p43 = scmp.eq.s32.totalorder %s12, 0
    %p44 = por %p42, %p43
    %p45 = scmp.ne.s32.totalorder %s34, %s37
    %p46 = scmp.eq.s32.totalorder %s17, 1
    %p47 = por %p45, %p46
    %p48 = scmp.ne.s32.totalorder %s37, %s38
    %p49 = scmp.eq.s32.totalorder %s17, 0
    %p50 = por %p48, %p49
    %p51 = scmp.ne.s32.totalorder %s37, %s38
    %p52 = scmp.eq.s32.totalorder %s18, 1
    %p53 = por %p51, %p52
    %p55 = scmp.ne.s32.totalorder %s38, %s54
    %p56 = scmp.eq.s32.totalorder %s18, 0
    %p57 = por %p55, %p56
    %s58 = ssub.s32 %s20, %s27
    %s59 = ssub.s32 %s19, %s31
    %s60 = sor.u32 %s58, %s59
    %p61 = scmp.eq.s32.totalorder %s60, 0
    %s63 = sadd.s32 %s62, 1
    %s64 = scalar_select %p61, %s62, %s63
    %p67 = pneg %p61
    %p68 = scmp.eq.s32.totalorder %s12, 1
    %p69 = por %p67, %p68
    %p70 = scmp.ne.s32.totalorder %s62, %s65
    %p71 = scmp.eq.s32.totalorder %s12, 0
    %p72 = por %p70, %p71
    %p73 = scmp.ne.s32.totalorder %s62, %s65
    %p74 = scmp.eq.s32.totalorder %s17, 1
    %p75 = por %p73, %p74
    %p76 = scmp.ne.s32.totalorder %s65, %s66
    %p77 = scmp.eq.s32.totalorder %s17, 0
    %p78 = por %p76, %p77
    %p79 = scmp.ne.s32.totalorder %s65, %s66
    %p80 = scmp.eq.s32.totalorder %s18, 1
    %p81 = por %p79, %p80
    %p83 = scmp.ne.s32.totalorder %s66, %s82
    %p84 = scmp.eq.s32.totalorder %s18, 0
    %p85 = por %p83, %p84
    %s86 = ssub.s32 %s20, %s27
    %s87 = ssub.s32 %s19, %s31
    %s88 = sor.u32 %s86, %s87
    %p89 = scmp.eq.s32.totalorder %s88, 0
    %s91 = sadd.s32 %s90, 1
    %s92 = scalar_select %p89, %s90, %s91
    %p95 = pneg %p89
    %p96 = scmp.eq.s32.totalorder %s12, 1
    %p97 = por %p95, %p96
    %p98 = scmp.ne.s32.totalorder %s90, %s93
    %p99 = scmp.eq.s32.totalorder %s12, 0
    %p100 = por %p98, %p99
    %p101 = scmp.ne.s32.totalorder %s90, %s93
    %p102 = scmp.eq.s32.totalorder %s17, 1
    %p103 = por %p101, %p102
    %p104 = scmp.ne.s32.totalorder %s93, %s94
    %p105 = scmp.eq.s32.totalorder %s17, 0
    %p106 = por %p104, %p105
    %p107 = scmp.ne.s32.totalorder %s93, %s94
    %p108 = scmp.eq.s32.totalorder %s18, 1
    %p109 = por %p107, %p108
    %p111 = scmp.ne.s32.totalorder %s94, %s110
    %p112 = scmp.eq.s32.totalorder %s18, 0
    %p113 = por %p111, %p112
    %s114 = ssub.s32 %s20, %s27
    %s115 = ssub.s32 %s19, %s31
    %s116 = sor.u32 %s114, %s115
    %p117 = scmp.eq.s32.totalorder %s116, 0
    %s119 = sadd.s32 %s118, 1
    %s120 = scalar_select %p117, %s118, %s119
    %p123 = pneg %p117
    %p124 = scmp.eq.s32.totalorder %s12, 1
    %p125 = por %p123, %p124
    %p126 = scmp.ne.s32.totalorder %s118, %s121
    %p127 = scmp.eq.s32.totalorder %s12, 0
    %p128 = por %p126, %p127
    %p129 = scmp.ne.s32.totalorder %s118, %s121
    %p130 = scmp.eq.s32.totalorder %s17, 1
    %p131 = por %p129, %p130
    %p132 = scmp.ne.s32.totalorder %s121, %s122
    %p133 = scmp.eq.s32.totalorder %s17, 0
    %p134 = por %p132, %p133
    %p135 = scmp.ne.s32.totalorder %s121, %s122
    %p136 = scmp.eq.s32.totalorder %s18, 1
    %p137 = por %p135, %p136
    %p139 = scmp.ne.s32.totalorder %s122, %s138
    %p140 = scmp.eq.s32.totalorder %s18, 0
    %p141 = por %p139, %p140
    %s143 = sadd.s32 %s142, 1
    %p146 = scmp.eq.s32.totalorder %s12, 1
    %p147 = scmp.ne.s32.totalorder %s142, %s144
    %p148 = scmp.eq.s32.totalorder %s12, 0
    %p149 = por %p147, %p148
    %p150 = scmp.ne.s32.totalorder %s142, %s144
    %p151 = scmp.eq.s32.totalorder %s17, 1
    %p152 = por %p150, %p151
    %p153 = scmp.ne.s32.totalorder %s144, %s145
    %p154 = scmp.eq.s32.totalorder %s17, 0
    %p155 = por %p153, %p154
    %p156 = scmp.ne.s32.totalorder %s144, %s145
    %p157 = scmp.eq.s32.totalorder %s18, 1
    %p158 = por %p156, %p157
    %p160 = scmp.ne.s32.totalorder %s145, %s159
    %p161 = scmp.eq.s32.totalorder %s18, 0
    %p162 = por %p160, %p161
    %s163 = ssub.s32 %s20, %s27
    %p164 = scmp.eq.s32.totalorder %s163, 0
    %s166 = sadd.s32 %s165, 1
    %s167 = scalar_select %p164, %s165, %s166
    %p170 = pneg %p164
    %p171 = scmp.eq.s32.totalorder %s12, 1
    %p172 = por %p170, %p171
    %p173 = scmp.ne.s32.totalorder %s165, %s168
    %p174 = scmp.eq.s32.totalorder %s12, 0
    %p175 = por %p173, %p174
    %p176 = scmp.ne.s32.totalorder %s165, %s168
    %p177 = scmp.eq.s32.totalorder %s17, 1
    %p178 = por %p176, %p177
    %p179 = scmp.ne.s32.totalorder %s168, %s169
    %p180 = scmp.eq.s32.totalorder %s17, 0
    %p181 = por %p179, %p180
    %p182 = scmp.ne.s32.totalorder %s168, %s169
    %p183 = scmp.eq.s32.totalorder %s18, 1
    %p184 = por %p182, %p183
    %p186 = scmp.ne.s32.totalorder %s169, %s185
    %p187 = scmp.eq.s32.totalorder %s18, 0
    %p188 = por %p186, %p187
    %s189 = ssub.s32 %s19, %s31
    %p190 = scmp.eq.s32.totalorder %s189, 0
    %s192 = sadd.s32 %s191, 1
    %s193 = scalar_select %p190, %s191, %s192
    %p196 = pneg %p190
    %p197 = scmp.eq.s32.totalorder %s12, 1
    %p198 = por %p196, %p197
    %p199 = scmp.ne.s32.totalorder %s191, %s194
    %p200 = scmp.eq.s32.totalorder %s12, 0
    %p201 = por %p199, %p200
    %p202 = scmp.ne.s32.totalorder %s191, %s194
    %p203 = scmp.eq.s32.totalorder %s17, 1
    %p204 = por %p202, %p203
    %p205 = scmp.ne.s32.totalorder %s194, %s195
    %p206 = scmp.eq.s32.totalorder %s17, 0
    %p207 = por %p205, %p206
    %p208 = scmp.ne.s32.totalorder %s194, %s195
    %p209 = scmp.eq.s32.totalorder %s18, 1
    %p210 = por %p208, %p209
    %p212 = scmp.ne.s32.totalorder %s195, %s211
    %p213 = scmp.eq.s32.totalorder %s18, 0
    %p214 = por %p212, %p213
    %p215 = scmp.le.s32.totalorder 1, %s12
    %p216 = scmp.lt.s32.totalorder %s12, 3
    %p217 = pnand %p215, %p216
    %p218 = pneg %p217
    // Predicated region
    $region9: #{tpu_custom_call.1} parent=5 // pred_check
      _
    $region10: #{tpu_custom_call.1} parent=5 // pred_check_branch
      %220 = sbr.rel (%p217) target = $region12
    $region11: #{tpu_custom_call.1} parent=5 // pred_region
      %s221 = ssub.s32 %s12, 1
      // Predicated region
      $region13: #{tpu_custom_call.1} parent=11 // pred_check
        %p222 = pneg %p50
      $region14: #{tpu_custom_call.1} parent=11 // pred_check_branch
        %224 = sbr.rel (%p222) target = $region16
      $region15: #{tpu_custom_call.1} parent=11 // pred_region
        %p225 = scmp.lt.s32.totalorder %s21, 0
        %s226 = scalar_select %p225, %s21, 0
        %s227 = smul.addr %s226, 8
        %s228 = scalar_lea.vmem %s0, %s227
      $region16: #{tpu_custom_call.1} parent=11 // pred_fallthru
        _
      // Predicated region
      $region17: #{tpu_custom_call.1} parent=11 // pred_check
        %p229 = pneg %p155
      $region18: #{tpu_custom_call.1} parent=11 // pred_check_branch
        %231 = sbr.rel (%p229) target = $region20
      $region19: #{tpu_custom_call.1} parent=11 // pred_region
        _
      $region20: #{tpu_custom_call.1} parent=11 // pred_fallthru
        _
    $region12: #{tpu_custom_call.1} parent=5 // pred_fallthru
      _
    %p232 = scmp.lt.s32.totalorder %s12, 2
    // Predicated region
    $region21: #{tpu_custom_call.1} parent=5 // pred_check
      %p233 = pneg %p232
    $region22: #{tpu_custom_call.1} parent=5 // pred_check_branch
      %235 = sbr.rel (%p233) target = $region24
    $region23: #{tpu_custom_call.1} parent=5 // pred_region
      // Predicated region
      $region25: #{tpu_custom_call.1} parent=23 // pred_check
        %p236 = pneg %p72
      $region26: #{tpu_custom_call.1} parent=23 // pred_check_branch
        %238 = sbr.rel (%p236) target = $region28
      $region27: #{tpu_custom_call.1} parent=23 // pred_region
        %s239 = smul.u32 4, %s20
        %p240 = scmp.lt.s32.totalorder %s239, 7
        %s241 = scalar_select %p240, %s239, 7
        %p242 = scmp.lt.s32.totalorder %s19, 0
        %s243 = scalar_select %p242, %s19, 0
        %s244 = sadd.s32 %s243, %s241
        %s245 = smul.addr %s244, 4
        %s246 = scalar_lea.vmem %s1, %s245
        %s247 = smul.u32 4, %s20
      $region28: #{tpu_custom_call.1} parent=23 // pred_fallthru
        _
      // Predicated region
      $region29: #{tpu_custom_call.1} parent=23 // pred_check
        %p248 = pneg %p100
      $region30: #{tpu_custom_call.1} parent=23 // pred_check_branch
        %250 = sbr.rel (%p248) target = $region32
      $region31: #{tpu_custom_call.1} parent=23 // pred_region
        %s251 = smul.u32 4, %s20
        %p252 = scmp.lt.s32.totalorder %s251, 7
        %s253 = scalar_select %p252, %s251, 7
        %p254 = scmp.lt.s32.totalorder %s19, 0
        %s255 = scalar_select %p254, %s19, 0
        %s256 = sadd.s32 %s255, %s253
        %s257 = smul.addr %s256, 4
        %s258 = scalar_lea.vmem %s2, %s257
        %s259 = smul.u32 4, %s20
      $region32: #{tpu_custom_call.1} parent=23 // pred_fallthru
        _
      // Predicated region
      $region33: #{tpu_custom_call.1} parent=23 // pred_check
        %p260 = pneg %p128
      $region34: #{tpu_custom_call.1} parent=23 // pred_check_branch
        %262 = sbr.rel (%p260) target = $region36
      $region35: #{tpu_custom_call.1} parent=23 // pred_region
        %s263 = smul.u32 4, %s20
        %p264 = scmp.lt.s32.totalorder %s263, 7
        %s265 = scalar_select %p264, %s263, 7
        %p266 = scmp.lt.s32.totalorder %s19, 0
        %s267 = scalar_select %p266, %s19, 0
        %s268 = sadd.s32 %s267, %s265
        %s269 = smul.addr %s268, 4
        %s270 = scalar_lea.vmem %s3, %s269
        %s271 = smul.u32 4, %s20
      $region36: #{tpu_custom_call.1} parent=23 // pred_fallthru
        _
      // Predicated region
      $region37: #{tpu_custom_call.1} parent=23 // pred_check
        %p272 = pneg %p175
      $region38: #{tpu_custom_call.1} parent=23 // pred_check_branch
        %274 = sbr.rel (%p272) target = $region40
      $region39: #{tpu_custom_call.1} parent=23 // pred_region
        %s275 = smul.u32 4, %s20
        %p276 = scmp.lt.s32.totalorder %s275, 7
        %s277 = scalar_select %p276, %s275, 7
        %s278 = smul.addr %s277, 20
        %s279 = smul.addr %s278, 4
        %s280 = scalar_lea.vmem %s5, %s279
        %s281 = smul.u32 4, %s20
      $region40: #{tpu_custom_call.1} parent=23 // pred_fallthru
        _
    $region24: #{tpu_custom_call.1} parent=5 // pred_fallthru
      _
    %p282 = scmp.le.s32.totalorder 1, %s12
    %p283 = scmp.lt.s32.totalorder %s12, 3
    %p284 = pnand %p282, %p283
    %p285 = pneg %p284
    // Predicated region
    $region41: #{tpu_custom_call.1} parent=5 // pred_check
      _
    $region42: #{tpu_custom_call.1} parent=5 // pred_check_branch
      %287 = sbr.rel (%p284) target = $region44
    $region43: #{tpu_custom_call.1} parent=5 // pred_region
      %s288 = ssub.s32 %s12, 1
      %p289 = scmp.lt.s32.totalorder %s21, 0
      %s290 = scalar_select %p289, %s21, 0
      %s291 = smul.addr %s290, 8
      %s292 = scalar_lea.vmem %s0, %s291
      %p293 = pneg %p50
      %p294 = pneg %p47
      %s295 = smul.u32 4, %s22
      %p296 = scmp.lt.s32.totalorder %s295, 7
      %s297 = scalar_select %p296, %s295, 7
      %p298 = scmp.lt.s32.totalorder %s21, 0
      %s299 = scalar_select %p298, %s21, 0
      %s300 = sadd.s32 %s299, %s297
      %s301 = smul.addr %s300, 4
      %s302 = scalar_lea.vmem %s1, %s301
      %p303 = pneg %p78
      %p304 = pneg %p75
      %s305 = smul.u32 4, %s22
      %p306 = scmp.lt.s32.totalorder %s305, 7
      %s307 = scalar_select %p306, %s305, 7
      %p308 = scmp.lt.s32.totalorder %s21, 0
      %s309 = scalar_select %p308, %s21, 0
      %s310 = sadd.s32 %s309, %s307
      %s311 = smul.addr %s310, 4
      %s312 = scalar_lea.vmem %s2, %s311
      %p313 = pneg %p106
      %p314 = pneg %p103
      %s315 = smul.u32 4, %s22
      %p316 = scmp.lt.s32.totalorder %s315, 7
      %s317 = scalar_select %p316, %s315, 7
      %p318 = scmp.lt.s32.totalorder %s21, 0
      %s319 = scalar_select %p318, %s21, 0
      %s320 = sadd.s32 %s319, %s317
      %s321 = smul.addr %s320, 4
      %s322 = scalar_lea.vmem %s3, %s321
      %p323 = pneg %p134
      %p324 = pneg %p131
      %p325 = pneg %p155
      %p326 = pneg %p152
      %s327 = smul.u32 4, %s22
      %p328 = scmp.lt.s32.totalorder %s327, 7
      %s329 = scalar_select %p328, %s327, 7
      %s330 = smul.addr %s329, 20
      %s331 = smul.addr %s330, 4
      %s332 = scalar_lea.vmem %s5, %s331
      %p333 = pneg %p181
      %p334 = pneg %p178
      %p335 = pneg %p207
      %p336 = pneg %p204
      %p337 = scmp.lt.s32.totalorder %s21, 0
      %s338 = scalar_select %p337, %s21, 0
      %s339 = smul.addr %s338, 8
      %s340 = scalar_lea.vmem %s6, %s339
      %p341 = scmp.lt.s32.totalorder %s21, 0
      %s342 = scalar_select %p341, %s21, 0
      %s343 = smul.addr %s342, 8
      %s344 = scalar_lea.vmem %s0, %s343
      %s345 = smul.u32 4, %s22
      %p346 = scmp.lt.s32.totalorder %s345, 7
      %s347 = scalar_select %p346, %s345, 7
      %p348 = scmp.lt.s32.totalorder %s21, 0
      %s349 = scalar_select %p348, %s21, 0
      %s350 = sadd.s32 %s349, %s347
      %s351 = smul.addr %s350, 4
      %s352 = scalar_lea.vmem %s1, %s351
      %s353 = smul.u32 4, %s22
      %s354 = smul.u32 4, %s22
      %p355 = scmp.lt.s32.totalorder %s354, 7
      %s356 = scalar_select %p355, %s354, 7
      %p357 = scmp.lt.s32.totalorder %s21, 0
      %s358 = scalar_select %p357, %s21, 0
      %s359 = sadd.s32 %s358, %s356
      %s360 = smul.addr %s359, 4
      %s361 = scalar_lea.vmem %s2, %s360
      %s362 = smul.u32 4, %s22
      %s363 = smul.u32 4, %s22
      %p364 = scmp.lt.s32.totalorder %s363, 7
      %s365 = scalar_select %p364, %s363, 7
      %p366 = scmp.lt.s32.totalorder %s21, 0
      %s367 = scalar_select %p366, %s21, 0
      %s368 = sadd.s32 %s367, %s365
      %s369 = smul.addr %s368, 4
      %s370 = scalar_lea.vmem %s3, %s369
      %s371 = smul.u32 4, %s22
      %s372 = smul.u32 4, %s22
      %p373 = scmp.lt.s32.totalorder %s372, 7
      %s374 = scalar_select %p373, %s372, 7
      %s375 = smul.addr %s374, 20
      %s376 = smul.addr %s375, 4
      %s377 = scalar_lea.vmem %s5, %s376
      %s378 = smul.u32 4, %s22
      %p379 = scmp.lt.s32.totalorder %s21, 0
      %s380 = scalar_select %p379, %s21, 0
      %s381 = smul.addr %s380, 8
      %s382 = scalar_lea.vmem %s6, %s381
      %p384 = scmp.eq.s32.totalorder %s22, 0
      // Predicated region
      $region45: #{tpu_custom_call.1} parent=43 // pred_check
        %p385 = pneg %p384
      $region46: #{tpu_custom_call.1} parent=43 // pred_check_branch
        %387 = sbr.rel (%p385) target = $region48
      $region47: #{tpu_custom_call.1} parent=43 // pred_region
        %v388 = vld [vmem:[%s344] sm:$0xff]
        %vm389 = vcmask 7168
        %390 = vst.msk [vmem:[%s382] sm:$0xff] %vm389, %v388
      $region48: #{tpu_custom_call.1} parent=43 // pred_fallthru
        _
      %v391 = vld [vmem:[%s4] sm:$0xf]
      %v392 = vunpack.c.l.bf16 %v391
      %v393 = vld [vmem:[%s382] sm:$0xff]
      loop: start=0, step=1, limit=2
      $region49: #{tpu_custom_call.1} parent=43 // loop_pre_header
        _
      $region50: #{tpu_custom_call.1} parent=43 // loop_header
        %s395 = sphi 0, %s399
        %p396 = scmp.ge.s32.totalorder %s395, 2
        %v400 = vphi %v393, %v1245
      $region51: #{tpu_custom_call.1} parent=43 // loop_header_branch
        %398 = sbr.rel (%p396) target = $region55
      $region52: #{tpu_custom_call.1} parent=43 // loop_body
        %s401 = smul.u32 %s395, 2
        %s402 = smul.addr %s401, 4
        %s403 = scalar_lea.vmem %s352, %s402
        %v404 = vld [vmem:[%s403] sm:$0xf]
        %v405 = vunpack.c.l.bf16 %v404
        %s406 = smul.addr %s401, 4
        %s407 = scalar_lea.vmem %s370, %s406
        %v408 = vld [vmem:[%s407] sm:$0xf]
        %v409 = vunpack.c.l.bf16 %v408
        %s410 = smul.addr %s401, 4
        %s411 = scalar_lea.vmem %s361, %s410
        %v412 = vld [vmem:[%s411] sm:$0xf]
        %v413 = vunpack.c.l.bf16 %v412
        %s414 = smul.u32 %s401, 20
        %s415 = smul.addr %s414, 4
        %s416 = scalar_lea.vmem %s377, %s415
        %v417 = vld [vmem:[%s416] sm:$0xf]
        %v418 = vld [vmem:[%s416 + $0x8] sm:$0xf]
        %v419 = vld [vmem:[%s416 + $0xc] sm:$0xf]
        %v420 = vld [vmem:[%s416 + $0x10] sm:$0xf]
        %v421 = vld [vmem:[%s416 + $0x14] sm:$0xf]
        %v422 = vld [vmem:[%s416 + $0x18] sm:$0xf]
        %v423 = vld [vmem:[%s416 + $0x1c] sm:$0xf]
        %v424 = vld [vmem:[%s416 + $0x20] sm:$0xf]
        %v425 = vld [vmem:[%s416 + $0x24] sm:$0xf]
        %v426 = vld [vmem:[%s416 + $0x28] sm:$0xf]
        %v427 = vld [vmem:[%s416 + $0x2c] sm:$0xf]
        %v428 = vld [vmem:[%s416 + $0x30] sm:$0xf]
        %v429 = vld [vmem:[%s416 + $0x34] sm:$0xf]
        %v430 = vld [vmem:[%s416 + $0x38] sm:$0xf]
        %v431 = vld [vmem:[%s416 + $0x3c] sm:$0xf]
        %v432 = vld [vmem:[%s416 + $0x40] sm:$0xf]
        %v433 = vld [vmem:[%s416 + $0x44] sm:$0xf]
        %v434 = vld [vmem:[%s416 + $0x48] sm:$0xf]
        %v435 = vunpack.c.l.bf16 %v434
        %v436 = vpack.c.bf16 %v409, %v405
        %v437 = vpack.c.bf16 %v392, %v392
        %vm438 = vcmask 64512
        %v440 = vsel %vm438, %v436, 0
        %v443 = vsel %vm438, %v437, 0
        %vm445 = vcmask 1043456
        %v447 = vsel %vm445, %v417, 0
        %449 = vmatpush.bf16.msra.mxu0 0
        %450 = vmatpush.bf16.msra.mxu0 0
        %451 = vmatpush.bf16.msra.mxu0 0
        %452 = vmatpush.bf16.msra.mxu0 0
        %453 = vmatpush.bf16.msra.mxu0 0
        %454 = vmatpush.bf16.msra.mxu0 0
        %455 = vmatpush.bf16.msra.mxu0 0
        %456 = vmatpush.bf16.msra.mxu0 %v447
        %457 = vmatmul.bf16.gmra.mxu0 %v440
        %v458 = vpop.f32.mrf.mxu0
        %v459 = vadd.f32 0.0, %v458
        %v460 = vpop.f32.mrf.mxu0
        %v461 = vadd.f32 0.0, %v460
        %462 = vmatmul.bf16.gmra.mxu0 %v443
        %v463 = vpop.f32.mrf.mxu0
        %v464 = vadd.f32 0.0, %v463
        %v465 = vpop.f32.mrf.mxu0
        %466 = vdwg.mxu0
        %v467 = vperm.slane %v435, 0
        %v468 = vadd.f32 %v459, %v467
        %v469 = vtanh.pop %v468
        %v470 = vadd.f32 %v459, %v461
        %v471 = vadd.f32 %v470, %v467
        %v472 = vtanh.pop %v471
        %v474 = vrot.slane %v459, 1
        %v475 = vrot.slane %v459, 2
        %v476 = vrot.slane %v459, 3
        %v477 = vrot.slane %v459, 4
        %v478 = vrot.slane %v459, 5
        %v479 = vrot.slane %v459, 6
        %v480 = vrot.slane %v459, 7
        %v481 = vperm.slane %v459, 0
        %v482 = vperm.slane %v474, 0
        %v483 = vperm.slane %v475, 0
        %v484 = vperm.slane %v476, 0
        %v485 = vperm.slane %v477, 0
        %v486 = vperm.slane %v478, 0
        %v487 = vperm.slane %v479, 0
        %v488 = vperm.slane %v480, 0
        %v497 = vadd.f32 %v481, %v464
        %v498 = vadd.f32 %v482, %v464
        %v499 = vadd.f32 %v483, %v464
        %v500 = vadd.f32 %v484, %v464
        %v501 = vadd.f32 %v485, %v464
        %v502 = vadd.f32 %v486, %v464
        %v503 = vadd.f32 %v487, %v464
        %v504 = vadd.f32 %v488, %v464
        %v505 = vadd.f32 %v497, %v467
        %v506 = vadd.f32 %v498, %v467
        %v507 = vadd.f32 %v499, %v467
        %v508 = vadd.f32 %v500, %v467
        %v509 = vadd.f32 %v501, %v467
        %v510 = vadd.f32 %v502, %v467
        %v511 = vadd.f32 %v503, %v467
        %v512 = vadd.f32 %v504, %v467
        %v513 = vtanh.pop %v505
        %v514 = vtanh.pop %v506
        %v515 = vtanh.pop %v507
        %v516 = vtanh.pop %v508
        %v517 = vtanh.pop %v509
        %v518 = vtanh.pop %v510
        %v519 = vtanh.pop %v511
        %v520 = vtanh.pop %v512
        %v521 = vpack.c.bf16 %v472, %v469
        %v522 = vpack.c.bf16 %v514, %v513
        %v523 = vpack.c.bf16 %v516, %v515
        %v524 = vpack.c.bf16 %v518, %v517
        %v525 = vpack.c.bf16 %v520, %v519
        %v526 = vperm.slane %v435, 1
        %v535 = vunpack.c.l.b16 %v418
        %v536 = vunpack.c.l.b16 %v419
        %v537 = vunpack.c.l.b16 %v420
        %v538 = vunpack.c.l.b16 %v421
        %v539 = vunpack.c.l.b16 %v422
        %v540 = vunpack.c.l.b16 %v423
        %v541 = vunpack.c.l.b16 %v424
        %v542 = vunpack.c.l.b16 %v425
        %v543 = vpack.c.b16 %v536, %v535
        %v544 = vpack.c.b16 %v538, %v537
        %v545 = vpack.c.b16 %v540, %v539
        %v546 = vpack.c.b16 %v542, %v541
        %vm551 = vcmask 523264
        %v553 = vsel %vm551, %v521, 0
        %v556 = vsel %vm551, %v522, 0
        %v559 = vsel %vm551, %v523, 0
        %v562 = vsel %vm551, %v524, 0
        %v565 = vsel %vm551, %v525, 0
        %567 = vmatpush.bf16.msra.mxu0 0
        %568 = vmatpush.bf16.msra.mxu0 0
        %569 = vmatpush.bf16.msra.mxu0 0
        %570 = vmatpush.bf16.msra.mxu0 0
        %571 = vmatpush.bf16.msra.mxu0 %v546
        %572 = vmatpush.bf16.msra.mxu0 %v545
        %573 = vmatpush.bf16.msra.mxu0 %v544
        %574 = vmatpush.bf16.msra.mxu0 %v543
        %575 = vmatmul.bf16.gmra.mxu0 %v553
        %v576 = vpop.f32.mrf.mxu0
        %v577 = vadd.f32 %v526, %v576
        %v578 = vpop.f32.mrf.mxu0
        %v579 = vadd.f32 %v526, %v578
        %580 = vmatmul.bf16.gmra.mxu0 %v556
        %v581 = vpop.f32.mrf.mxu0
        %v582 = vadd.f32 %v526, %v581
        %v583 = vpop.f32.mrf.mxu0
        %v584 = vadd.f32 %v526, %v583
        %585 = vmatmul.bf16.gmra.mxu0 %v559
        %v586 = vpop.f32.mrf.mxu0
        %v587 = vadd.f32 %v526, %v586
        %v588 = vpop.f32.mrf.mxu0
        %v589 = vadd.f32 %v526, %v588
        %590 = vmatmul.bf16.gmra.mxu0 %v562
        %v591 = vpop.f32.mrf.mxu0
        %v592 = vadd.f32 %v526, %v591
        %v593 = vpop.f32.mrf.mxu0
        %v594 = vadd.f32 %v526, %v593
        %595 = vmatmul.bf16.gmra.mxu0 %v565
        %v596 = vpop.f32.mrf.mxu0
        %v597 = vadd.f32 %v526, %v596
        %v598 = vpop.f32.mrf.mxu0
        %v599 = vadd.f32 %v526, %v598
        %600 = vdwg.mxu0
        %v601 = vtanh.pop %v577
        %v602 = vtanh.pop %v579
        %v603 = vtanh.pop %v582
        %v604 = vtanh.pop %v584
        %v605 = vtanh.pop %v587
        %v606 = vtanh.pop %v589
        %v607 = vtanh.pop %v592
        %v608 = vtanh.pop %v594
        %v609 = vtanh.pop %v597
        %v610 = vtanh.pop %v599
        %v611 = vpack.c.bf16 %v602, %v601
        %v612 = vpack.c.bf16 %v604, %v603
        %v613 = vpack.c.bf16 %v606, %v605
        %v614 = vpack.c.bf16 %v608, %v607
        %v615 = vpack.c.bf16 %v610, %v609
        %v616 = vperm.slane %v435, 2
        %v625 = vunpack.c.l.b16 %v426
        %v626 = vunpack.c.l.b16 %v427
        %v627 = vunpack.c.l.b16 %v428
        %v628 = vunpack.c.l.b16 %v429
        %v629 = vunpack.c.l.b16 %v430
        %v630 = vunpack.c.l.b16 %v431
        %v631 = vunpack.c.l.b16 %v432
        %v632 = vunpack.c.l.b16 %v433
        %v633 = vpack.c.b16 %v626, %v625
        %v634 = vpack.c.b16 %v628, %v627
        %v635 = vpack.c.b16 %v630, %v629
        %v636 = vpack.c.b16 %v632, %v631
        %v642 = vsel %vm551, %v611, 0
        %v645 = vsel %vm551, %v612, 0
        %v648 = vsel %vm551, %v613, 0
        %v651 = vsel %vm551, %v614, 0
        %v654 = vsel %vm551, %v615, 0
        %656 = vmatpush.bf16.msra.mxu0 0
        %657 = vmatpush.bf16.msra.mxu0 0
        %658 = vmatpush.bf16.msra.mxu0 0
        %659 = vmatpush.bf16.msra.mxu0 0
        %660 = vmatpush.bf16.msra.mxu0 %v636
        %661 = vmatpush.bf16.msra.mxu0 %v635
        %662 = vmatpush.bf16.msra.mxu0 %v634
        %663 = vmatpush.bf16.msra.mxu0 %v633
        %664 = vmatmul.bf16.gmra.mxu0 %v642
        %v665 = vpop.f32.mrf.mxu0
        %v666 = vadd.f32 %v616, %v665
        %v667 = vpop.f32.mrf.mxu0
        %v668 = vadd.f32 %v616, %v667
        %669 = vmatmul.bf16.gmra.mxu0 %v645
        %v670 = vpop.f32.mrf.mxu0
        %v671 = vadd.f32 %v616, %v670
        %v672 = vpop.f32.mrf.mxu0
        %v673 = vadd.f32 %v616, %v672
        %674 = vmatmul.bf16.gmra.mxu0 %v648
        %v675 = vpop.f32.mrf.mxu0
        %v676 = vadd.f32 %v616, %v675
        %v677 = vpop.f32.mrf.mxu0
        %v678 = vadd.f32 %v616, %v677
        %679 = vmatmul.bf16.gmra.mxu0 %v651
        %v680 = vpop.f32.mrf.mxu0
        %v681 = vadd.f32 %v616, %v680
        %v682 = vpop.f32.mrf.mxu0
        %v683 = vadd.f32 %v616, %v682
        %684 = vmatmul.bf16.gmra.mxu0 %v654
        %v685 = vpop.f32.mrf.mxu0
        %v686 = vadd.f32 %v616, %v685
        %v687 = vpop.f32.mrf.mxu0
        %v688 = vadd.f32 %v616, %v687
        %689 = vdwg.mxu0
        %vm690 = vcmask 269568
        %v691 = vsel %vm690, %v671, 0.0
        %v692 = vrot.slane %v691, 4
        %v693 = vadd.f32 %v691, %v692
        %v694 = vrot.slane %v693, 2
        %v695 = vadd.f32 %v693, %v694
        %v696 = vrot.slane %v695, 1
        %v697 = vadd.f32 %v695, %v696
        %v698 = vsel %vm690, %v673, 0.0
        %v699 = vrot.slane %v698, 4
        %v700 = vadd.f32 %v698, %v699
        %v701 = vrot.slane %v700, 2
        %v702 = vadd.f32 %v700, %v701
        %v703 = vrot.slane %v702, 1
        %v704 = vadd.f32 %v702, %v703
        %v705 = vsel %vm690, %v676, 0.0
        %v706 = vrot.slane %v705, 4
        %v707 = vadd.f32 %v705, %v706
        %v708 = vrot.slane %v707, 2
        %v709 = vadd.f32 %v707, %v708
        %v710 = vrot.slane %v709, 1
        %v711 = vadd.f32 %v709, %v710
        %v712 = vsel %vm690, %v678, 0.0
        %v713 = vrot.slane %v712, 4
        %v714 = vadd.f32 %v712, %v713
        %v715 = vrot.slane %v714, 2
        %v716 = vadd.f32 %v714, %v715
        %v717 = vrot.slane %v716, 1
        %v718 = vadd.f32 %v716, %v717
        %v719 = vsel %vm690, %v681, 0.0
        %v720 = vrot.slane %v719, 4
        %v721 = vadd.f32 %v719, %v720
        %v722 = vrot.slane %v721, 2
        %v723 = vadd.f32 %v721, %v722
        %v724 = vrot.slane %v723, 1
        %v725 = vadd.f32 %v723, %v724
        %v726 = vsel %vm690, %v683, 0.0
        %v727 = vrot.slane %v726, 4
        %v728 = vadd.f32 %v726, %v727
        %v729 = vrot.slane %v728, 2
        %v730 = vadd.f32 %v728, %v729
        %v731 = vrot.slane %v730, 1
        %v732 = vadd.f32 %v730, %v731
        %v733 = vsel %vm690, %v686, 0.0
        %v734 = vrot.slane %v733, 4
        %v735 = vadd.f32 %v733, %v734
        %v736 = vrot.slane %v735, 2
        %v737 = vadd.f32 %v735, %v736
        %v738 = vrot.slane %v737, 1
        %v739 = vadd.f32 %v737, %v738
        %v740 = vsel %vm690, %v688, 0.0
        %v741 = vrot.slane %v740, 4
        %v742 = vadd.f32 %v740, %v741
        %v743 = vrot.slane %v742, 2
        %v744 = vadd.f32 %v742, %v743
        %v745 = vrot.slane %v744, 1
        %v746 = vadd.f32 %v744, %v745
        %v747 = vmul.f32 %v697, 0.125
        %v748 = vmul.f32 %v704, 0.125
        %v749 = vmul.f32 %v711, 0.125
        %v750 = vmul.f32 %v718, 0.125
        %v751 = vmul.f32 %v725, 0.125
        %v752 = vmul.f32 %v732, 0.125
        %v753 = vmul.f32 %v739, 0.125
        %v754 = vmul.f32 %v746, 0.125
        %v755 = vmul.f32 %v666, %v413
        %v756 = vsel %vm438, %v755, 0.0
        %757 = vadd.xlane.f32.xlu0 %v756
        %v758 = vpop.xlane.xlu0 %757
        %v759 = vsub.f32 %v668, %v666
        %v761 = vrot.slane %v666, 1
        %v762 = vrot.slane %v666, 2
        %v763 = vrot.slane %v666, 3
        %v764 = vrot.slane %v666, 4
        %v765 = vrot.slane %v666, 5
        %v766 = vrot.slane %v666, 6
        %v767 = vrot.slane %v666, 7
        %v776 = vsub.f32 %v747, %v666
        %v777 = vsub.f32 %v748, %v761
        %v778 = vsub.f32 %v749, %v762
        %v779 = vsub.f32 %v750, %v763
        %v780 = vsub.f32 %v751, %v764
        %v781 = vsub.f32 %v752, %v765
        %v782 = vsub.f32 %v753, %v766
        %v783 = vsub.f32 %v754, %v767
        %v784 = vmul.f32 %v776, 0.125
        %v785 = vmul.f32 %v777, 0.125
        %v786 = vmul.f32 %v778, 0.125
        %v787 = vmul.f32 %v779, 0.125
        %v788 = vmul.f32 %v780, 0.125
        %v789 = vmul.f32 %v781, 0.125
        %v790 = vmul.f32 %v782, 0.125
        %v791 = vmul.f32 %v783, 0.125
        %v800 = vrot.slane %v785, 7
        %vm801 = vcmask 1041409
        %v802 = vsel %vm801, %v800, %v784
        %v803 = vrot.slane %v786, 6
        %vm804 = vcmask 1042434
        %v805 = vsel %vm804, %v803, %v802
        %v806 = vrot.slane %v787, 5
        %vm807 = vcmask 1043459
        %v808 = vsel %vm807, %v806, %v805
        %v809 = vrot.slane %v788, 4
        %vm810 = vcmask 1044484
        %v811 = vsel %vm810, %v809, %v808
        %v812 = vrot.slane %v789, 3
        %vm813 = vcmask 1045509
        %v814 = vsel %vm813, %v812, %v811
        %v815 = vrot.slane %v790, 2
        %vm816 = vcmask 1046534
        %v817 = vsel %vm816, %v815, %v814
        %v818 = vrot.slane %v791, 1
        %vm819 = vcmask 1047559
        %v820 = vsel %vm819, %v818, %v817
        %v822 = vsub.f32 %v759, %v820
        %v823 = vmul.f32 %v400, 0.00625
        %v824 = vsub.f32 %v400, %v823
        %v825 = vadd.f32 %v824, %v758
        %827 = vrot.lane.b32.xlu0 %v822, 96
        %v828 = vpop.permute.xlu0 %827
        %v830 = vadd.f32 %v825, %v828
        %s831 = sadd.s32 %s401, 1
        %s832 = smul.addr %s831, 4
        %s833 = scalar_lea.vmem %s352, %s832
        %v834 = vld [vmem:[%s833] sm:$0xf]
        %v835 = vunpack.c.l.bf16 %v834
        %s836 = smul.addr %s831, 4
        %s837 = scalar_lea.vmem %s370, %s836
        %v838 = vld [vmem:[%s837] sm:$0xf]
        %v839 = vunpack.c.l.bf16 %v838
        %s840 = smul.addr %s831, 4
        %s841 = scalar_lea.vmem %s361, %s840
        %v842 = vld [vmem:[%s841] sm:$0xf]
        %v843 = vunpack.c.l.bf16 %v842
        %s844 = smul.u32 %s831, 20
        %s845 = smul.addr %s844, 4
        %s846 = scalar_lea.vmem %s377, %s845
        %v847 = vld [vmem:[%s846] sm:$0xf]
        %v848 = vld [vmem:[%s846 + $0x8] sm:$0xf]
        %v849 = vld [vmem:[%s846 + $0xc] sm:$0xf]
        %v850 = vld [vmem:[%s846 + $0x10] sm:$0xf]
        %v851 = vld [vmem:[%s846 + $0x14] sm:$0xf]
        %v852 = vld [vmem:[%s846 + $0x18] sm:$0xf]
        %v853 = vld [vmem:[%s846 + $0x1c] sm:$0xf]
        %v854 = vld [vmem:[%s846 + $0x20] sm:$0xf]
        %v855 = vld [vmem:[%s846 + $0x24] sm:$0xf]
        %v856 = vld [vmem:[%s846 + $0x28] sm:$0xf]
        %v857 = vld [vmem:[%s846 + $0x2c] sm:$0xf]
        %v858 = vld [vmem:[%s846 + $0x30] sm:$0xf]
        %v859 = vld [vmem:[%s846 + $0x34] sm:$0xf]
        %v860 = vld [vmem:[%s846 + $0x38] sm:$0xf]
        %v861 = vld [vmem:[%s846 + $0x3c] sm:$0xf]
        %v862 = vld [vmem:[%s846 + $0x40] sm:$0xf]
        %v863 = vld [vmem:[%s846 + $0x44] sm:$0xf]
        %v864 = vld [vmem:[%s846 + $0x48] sm:$0xf]
        %v865 = vunpack.c.l.bf16 %v864
        %v866 = vpack.c.bf16 %v839, %v835
        %v868 = vsel %vm438, %v866, 0
        %v871 = vsel %vm445, %v847, 0
        %873 = vmatpush.bf16.msra.mxu0 0
        %874 = vmatpush.bf16.msra.mxu0 0
        %875 = vmatpush.bf16.msra.mxu0 0
        %876 = vmatpush.bf16.msra.mxu0 0
        %877 = vmatpush.bf16.msra.mxu0 0
        %878 = vmatpush.bf16.msra.mxu0 0
        %879 = vmatpush.bf16.msra.mxu0 0
        %880 = vmatpush.bf16.msra.mxu0 %v871
        %881 = vmatmul.bf16.gmra.mxu0 %v868
        %v882 = vpop.f32.mrf.mxu0
        %v883 = vadd.f32 0.0, %v882
        %v884 = vpop.f32.mrf.mxu0
        %v885 = vadd.f32 0.0, %v884
        %886 = vmatmul.bf16.gmra.mxu0 %v443
        %v887 = vpop.f32.mrf.mxu0
        %v888 = vadd.f32 0.0, %v887
        %v889 = vpop.f32.mrf.mxu0
        %890 = vdwg.mxu0
        %v891 = vperm.slane %v865, 0
        %v892 = vadd.f32 %v883, %v891
        %v893 = vtanh.pop %v892
        %v894 = vadd.f32 %v883, %v885
        %v895 = vadd.f32 %v894, %v891
        %v896 = vtanh.pop %v895
        %v898 = vrot.slane %v883, 1
        %v899 = vrot.slane %v883, 2
        %v900 = vrot.slane %v883, 3
        %v901 = vrot.slane %v883, 4
        %v902 = vrot.slane %v883, 5
        %v903 = vrot.slane %v883, 6
        %v904 = vrot.slane %v883, 7
        %v905 = vperm.slane %v883, 0
        %v906 = vperm.slane %v898, 0
        %v907 = vperm.slane %v899, 0
        %v908 = vperm.slane %v900, 0
        %v909 = vperm.slane %v901, 0
        %v910 = vperm.slane %v902, 0
        %v911 = vperm.slane %v903, 0
        %v912 = vperm.slane %v904, 0
        %v921 = vadd.f32 %v905, %v888
        %v922 = vadd.f32 %v906, %v888
        %v923 = vadd.f32 %v907, %v888
        %v924 = vadd.f32 %v908, %v888
        %v925 = vadd.f32 %v909, %v888
        %v926 = vadd.f32 %v910, %v888
        %v927 = vadd.f32 %v911, %v888
        %v928 = vadd.f32 %v912, %v888
        %v929 = vadd.f32 %v921, %v891
        %v930 = vadd.f32 %v922, %v891
        %v931 = vadd.f32 %v923, %v891
        %v932 = vadd.f32 %v924, %v891
        %v933 = vadd.f32 %v925, %v891
        %v934 = vadd.f32 %v926, %v891
        %v935 = vadd.f32 %v927, %v891
        %v936 = vadd.f32 %v928, %v891
        %v937 = vtanh.pop %v929
        %v938 = vtanh.pop %v930
        %v939 = vtanh.pop %v931
        %v940 = vtanh.pop %v932
        %v941 = vtanh.pop %v933
        %v942 = vtanh.pop %v934
        %v943 = vtanh.pop %v935
        %v944 = vtanh.pop %v936
        %v945 = vpack.c.bf16 %v896, %v893
        %v946 = vpack.c.bf16 %v938, %v937
        %v947 = vpack.c.bf16 %v940, %v939
        %v948 = vpack.c.bf16 %v942, %v941
        %v949 = vpack.c.bf16 %v944, %v943
        %v950 = vperm.slane %v865, 1
        %v959 = vunpack.c.l.b16 %v848
        %v960 = vunpack.c.l.b16 %v849
        %v961 = vunpack.c.l.b16 %v850
        %v962 = vunpack.c.l.b16 %v851
        %v963 = vunpack.c.l.b16 %v852
        %v964 = vunpack.c.l.b16 %v853
        %v965 = vunpack.c.l.b16 %v854
        %v966 = vunpack.c.l.b16 %v855
        %v967 = vpack.c.b16 %v960, %v959
        %v968 = vpack.c.b16 %v962, %v961
        %v969 = vpack.c.b16 %v964, %v963
        %v970 = vpack.c.b16 %v966, %v965
        %v976 = vsel %vm551, %v945, 0
        %v979 = vsel %vm551, %v946, 0
        %v982 = vsel %vm551, %v947, 0
        %v985 = vsel %vm551, %v948, 0
        %v988 = vsel %vm551, %v949, 0
        %990 = vmatpush.bf16.msra.mxu0 0
        %991 = vmatpush.bf16.msra.mxu0 0
        %992 = vmatpush.bf16.msra.mxu0 0
        %993 = vmatpush.bf16.msra.mxu0 0
        %994 = vmatpush.bf16.msra.mxu0 %v970
        %995 = vmatpush.bf16.msra.mxu0 %v969
        %996 = vmatpush.bf16.msra.mxu0 %v968
        %997 = vmatpush.bf16.msra.mxu0 %v967
        %998 = vmatmul.bf16.gmra.mxu0 %v976
        %v999 = vpop.f32.mrf.mxu0
        %v1000 = vadd.f32 %v950, %v999
        %v1001 = vpop.f32.mrf.mxu0
        %v1002 = vadd.f32 %v950, %v1001
        %1003 = vmatmul.bf16.gmra.mxu0 %v979
        %v1004 = vpop.f32.mrf.mxu0
        %v1005 = vadd.f32 %v950, %v1004
        %v1006 = vpop.f32.mrf.mxu0
        %v1007 = vadd.f32 %v950, %v1006
        %1008 = vmatmul.bf16.gmra.mxu0 %v982
        %v1009 = vpop.f32.mrf.mxu0
        %v1010 = vadd.f32 %v950, %v1009
        %v1011 = vpop.f32.mrf.mxu0
        %v1012 = vadd.f32 %v950, %v1011
        %1013 = vmatmul.bf16.gmra.mxu0 %v985
        %v1014 = vpop.f32.mrf.mxu0
        %v1015 = vadd.f32 %v950, %v1014
        %v1016 = vpop.f32.mrf.mxu0
        %v1017 = vadd.f32 %v950, %v1016
        %1018 = vmatmul.bf16.gmra.mxu0 %v988
        %v1019 = vpop.f32.mrf.mxu0
        %v1020 = vadd.f32 %v950, %v1019
        %v1021 = vpop.f32.mrf.mxu0
        %v1022 = vadd.f32 %v950, %v1021
        %1023 = vdwg.mxu0
        %v1024 = vtanh.pop %v1000
        %v1025 = vtanh.pop %v1002
        %v1026 = vtanh.pop %v1005
        %v1027 = vtanh.pop %v1007
        %v1028 = vtanh.pop %v1010
        %v1029 = vtanh.pop %v1012
        %v1030 = vtanh.pop %v1015
        %v1031 = vtanh.pop %v1017
        %v1032 = vtanh.pop %v1020
        %v1033 = vtanh.pop %v1022
        %v1034 = vpack.c.bf16 %v1025, %v1024
        %v1035 = vpack.c.bf16 %v1027, %v1026
        %v1036 = vpack.c.bf16 %v1029, %v1028
        %v1037 = vpack.c.bf16 %v1031, %v1030
        %v1038 = vpack.c.bf16 %v1033, %v1032
        %v1039 = vperm.slane %v865, 2
        %v1048 = vunpack.c.l.b16 %v856
        %v1049 = vunpack.c.l.b16 %v857
        %v1050 = vunpack.c.l.b16 %v858
        %v1051 = vunpack.c.l.b16 %v859
        %v1052 = vunpack.c.l.b16 %v860
        %v1053 = vunpack.c.l.b16 %v861
        %v1054 = vunpack.c.l.b16 %v862
        %v1055 = vunpack.c.l.b16 %v863
        %v1056 = vpack.c.b16 %v1049, %v1048
        %v1057 = vpack.c.b16 %v1051, %v1050
        %v1058 = vpack.c.b16 %v1053, %v1052
        %v1059 = vpack.c.b16 %v1055, %v1054
        %v1065 = vsel %vm551, %v1034, 0
        %v1068 = vsel %vm551, %v1035, 0
        %v1071 = vsel %vm551, %v1036, 0
        %v1074 = vsel %vm551, %v1037, 0
        %v1077 = vsel %vm551, %v1038, 0
        %1079 = vmatpush.bf16.msra.mxu0 0
        %1080 = vmatpush.bf16.msra.mxu0 0
        %1081 = vmatpush.bf16.msra.mxu0 0
        %1082 = vmatpush.bf16.msra.mxu0 0
        %1083 = vmatpush.bf16.msra.mxu0 %v1059
        %1084 = vmatpush.bf16.msra.mxu0 %v1058
        %1085 = vmatpush.bf16.msra.mxu0 %v1057
        %1086 = vmatpush.bf16.msra.mxu0 %v1056
        %1087 = vmatmul.bf16.gmra.mxu0 %v1065
        %v1088 = vpop.f32.mrf.mxu0
        %v1089 = vadd.f32 %v1039, %v1088
        %v1090 = vpop.f32.mrf.mxu0
        %v1091 = vadd.f32 %v1039, %v1090
        %1092 = vmatmul.bf16.gmra.mxu0 %v1068
        %v1093 = vpop.f32.mrf.mxu0
        %v1094 = vadd.f32 %v1039, %v1093
        %v1095 = vpop.f32.mrf.mxu0
        %v1096 = vadd.f32 %v1039, %v1095
        %1097 = vmatmul.bf16.gmra.mxu0 %v1071
        %v1098 = vpop.f32.mrf.mxu0
        %v1099 = vadd.f32 %v1039, %v1098
        %v1100 = vpop.f32.mrf.mxu0
        %v1101 = vadd.f32 %v1039, %v1100
        %1102 = vmatmul.bf16.gmra.mxu0 %v1074
        %v1103 = vpop.f32.mrf.mxu0
        %v1104 = vadd.f32 %v1039, %v1103
        %v1105 = vpop.f32.mrf.mxu0
        %v1106 = vadd.f32 %v1039, %v1105
        %1107 = vmatmul.bf16.gmra.mxu0 %v1077
        %v1108 = vpop.f32.mrf.mxu0
        %v1109 = vadd.f32 %v1039, %v1108
        %v1110 = vpop.f32.mrf.mxu0
        %v1111 = vadd.f32 %v1039, %v1110
        %1112 = vdwg.mxu0
        %v1113 = vsel %vm690, %v1094, 0.0
        %v1114 = vrot.slane %v1113, 4
        %v1115 = vadd.f32 %v1113, %v1114
        %v1116 = vrot.slane %v1115, 2
        %v1117 = vadd.f32 %v1115, %v1116
        %v1118 = vrot.slane %v1117, 1
        %v1119 = vadd.f32 %v1117, %v1118
        %v1120 = vsel %vm690, %v1096, 0.0
        %v1121 = vrot.slane %v1120, 4
        %v1122 = vadd.f32 %v1120, %v1121
        %v1123 = vrot.slane %v1122, 2
        %v1124 = vadd.f32 %v1122, %v1123
        %v1125 = vrot.slane %v1124, 1
        %v1126 = vadd.f32 %v1124, %v1125
        %v1127 = vsel %vm690, %v1099, 0.0
        %v1128 = vrot.slane %v1127, 4
        %v1129 = vadd.f32 %v1127, %v1128
        %v1130 = vrot.slane %v1129, 2
        %v1131 = vadd.f32 %v1129, %v1130
        %v1132 = vrot.slane %v1131, 1
        %v1133 = vadd.f32 %v1131, %v1132
        %v1134 = vsel %vm690, %v1101, 0.0
        %v1135 = vrot.slane %v1134, 4
        %v1136 = vadd.f32 %v1134, %v1135
        %v1137 = vrot.slane %v1136, 2
        %v1138 = vadd.f32 %v1136, %v1137
        %v1139 = vrot.slane %v1138, 1
        %v1140 = vadd.f32 %v1138, %v1139
        %v1141 = vsel %vm690, %v1104, 0.0
        %v1142 = vrot.slane %v1141, 4
        %v1143 = vadd.f32 %v1141, %v1142
        %v1144 = vrot.slane %v1143, 2
        %v1145 = vadd.f32 %v1143, %v1144
        %v1146 = vrot.slane %v1145, 1
        %v1147 = vadd.f32 %v1145, %v1146
        %v1148 = vsel %vm690, %v1106, 0.0
        %v1149 = vrot.slane %v1148, 4
        %v1150 = vadd.f32 %v1148, %v1149
        %v1151 = vrot.slane %v1150, 2
        %v1152 = vadd.f32 %v1150, %v1151
        %v1153 = vrot.slane %v1152, 1
        %v1154 = vadd.f32 %v1152, %v1153
        %v1155 = vsel %vm690, %v1109, 0.0
        %v1156 = vrot.slane %v1155, 4
        %v1157 = vadd.f32 %v1155, %v1156
        %v1158 = vrot.slane %v1157, 2
        %v1159 = vadd.f32 %v1157, %v1158
        %v1160 = vrot.slane %v1159, 1
        %v1161 = vadd.f32 %v1159, %v1160
        %v1162 = vsel %vm690, %v1111, 0.0
        %v1163 = vrot.slane %v1162, 4
        %v1164 = vadd.f32 %v1162, %v1163
        %v1165 = vrot.slane %v1164, 2
        %v1166 = vadd.f32 %v1164, %v1165
        %v1167 = vrot.slane %v1166, 1
        %v1168 = vadd.f32 %v1166, %v1167
        %v1169 = vmul.f32 %v1119, 0.125
        %v1170 = vmul.f32 %v1126, 0.125
        %v1171 = vmul.f32 %v1133, 0.125
        %v1172 = vmul.f32 %v1140, 0.125
        %v1173 = vmul.f32 %v1147, 0.125
        %v1174 = vmul.f32 %v1154, 0.125
        %v1175 = vmul.f32 %v1161, 0.125
        %v1176 = vmul.f32 %v1168, 0.125
        %v1177 = vmul.f32 %v1089, %v843
        %v1178 = vsel %vm438, %v1177, 0.0
        %1179 = vadd.xlane.f32.xlu0 %v1178
        %v1180 = vpop.xlane.xlu0 %1179
        %v1181 = vsub.f32 %v1091, %v1089
        %v1183 = vrot.slane %v1089, 1
        %v1184 = vrot.slane %v1089, 2
        %v1185 = vrot.slane %v1089, 3
        %v1186 = vrot.slane %v1089, 4
        %v1187 = vrot.slane %v1089, 5
        %v1188 = vrot.slane %v1089, 6
        %v1189 = vrot.slane %v1089, 7
        %v1198 = vsub.f32 %v1169, %v1089
        %v1199 = vsub.f32 %v1170, %v1183
        %v1200 = vsub.f32 %v1171, %v1184
        %v1201 = vsub.f32 %v1172, %v1185
        %v1202 = vsub.f32 %v1173, %v1186
        %v1203 = vsub.f32 %v1174, %v1187
        %v1204 = vsub.f32 %v1175, %v1188
        %v1205 = vsub.f32 %v1176, %v1189
        %v1206 = vmul.f32 %v1198, 0.125
        %v1207 = vmul.f32 %v1199, 0.125
        %v1208 = vmul.f32 %v1200, 0.125
        %v1209 = vmul.f32 %v1201, 0.125
        %v1210 = vmul.f32 %v1202, 0.125
        %v1211 = vmul.f32 %v1203, 0.125
        %v1212 = vmul.f32 %v1204, 0.125
        %v1213 = vmul.f32 %v1205, 0.125
        %v1222 = vrot.slane %v1207, 7
        %v1223 = vsel %vm801, %v1222, %v1206
        %v1224 = vrot.slane %v1208, 6
        %v1225 = vsel %vm804, %v1224, %v1223
        %v1226 = vrot.slane %v1209, 5
        %v1227 = vsel %vm807, %v1226, %v1225
        %v1228 = vrot.slane %v1210, 4
        %v1229 = vsel %vm810, %v1228, %v1227
        %v1230 = vrot.slane %v1211, 3
        %v1231 = vsel %vm813, %v1230, %v1229
        %v1232 = vrot.slane %v1212, 2
        %v1233 = vsel %vm816, %v1232, %v1231
        %v1234 = vrot.slane %v1213, 1
        %v1235 = vsel %vm819, %v1234, %v1233
        %v1237 = vsub.f32 %v1181, %v1235
        %v1238 = vmul.f32 %v830, 0.00625
        %v1239 = vsub.f32 %v830, %v1238
        %v1240 = vadd.f32 %v1239, %v1180
        %1242 = vrot.lane.b32.xlu0 %v1237, 96
        %v1243 = vpop.permute.xlu0 %1242
        %v1245 = vadd.f32 %v1240, %v1243
      $region53: #{tpu_custom_call.1} parent=43 // loop_footer
        %s399 = sadd.s32 1, %s395
      $region54: #{tpu_custom_call.1} parent=43 // loop_footer_branch
        %394 = sbr.rel target = $region50
      $region55: #{tpu_custom_call.1} parent=43 // loop_exit
        _
      %vm1246 = vcmask 7168
      %1247 = vst.msk [vmem:[%s382] sm:$0xff] %vm1246, %v400
      %p1248 = scmp.lt.s32.totalorder %s21, 0
      %s1249 = scalar_select %p1248, %s21, 0
      %s1250 = smul.addr %s1249, 8
      %s1251 = scalar_lea.vmem %s6, %s1250
      // Predicated region
      $region56: #{tpu_custom_call.1} parent=43 // pred_check
        %p1252 = pneg %p204
      $region57: #{tpu_custom_call.1} parent=43 // pred_check_branch
        %1254 = sbr.rel (%p1252) target = $region59
      $region58: #{tpu_custom_call.1} parent=43 // pred_region
        _
      $region59: #{tpu_custom_call.1} parent=43 // pred_fallthru
        _
      // Predicated region
      $region60: #{tpu_custom_call.1} parent=43 // pred_check
        %p1255 = pneg %p204
      $region61: #{tpu_custom_call.1} parent=43 // pred_check_branch
        %1257 = sbr.rel (%p1255) target = $region63
      $region62: #{tpu_custom_call.1} parent=43 // pred_region
        %p1258 = scmp.lt.s32.totalorder %s21, 0
        %s1259 = scalar_select %p1258, %s21, 0
        %s1260 = smul.addr %s1259, 8
        %s1261 = scalar_lea.vmem %s6, %s1260
      $region63: #{tpu_custom_call.1} parent=43 // pred_fallthru
        _
    $region44: #{tpu_custom_call.1} parent=5 // pred_fallthru
      _
    %p1262 = scmp.le.s32.totalorder 2, %s12
    // Predicated region
    $region64: #{tpu_custom_call.1} parent=5 // pred_check
      %p1263 = pneg %p1262
    $region65: #{tpu_custom_call.1} parent=5 // pred_check_branch
      %1265 = sbr.rel (%p1263) target = $region67
    $region66: #{tpu_custom_call.1} parent=5 // pred_region
      %s1266 = ssub.s32 %s12, 2
    $region67: #{tpu_custom_call.1} parent=5 // pred_fallthru
      _
  $region6: #{tpu_custom_call.1} parent=0 // loop_footer
    %s16 = sadd.s32 1, %s12
  $region7: #{tpu_custom_call.1} parent=0 // loop_footer_branch
    %11 = sbr.rel target = $region3
  $region8: #{tpu_custom_call.1} parent=0 // loop_exit
    _

</llo_original>
